<compile_context>
chip_gen: v7x
topology: tpu7x:2x2x1
jax: 0.10.0
libtpu: 0.0.40
codegen_flags: <defaults>
</compile_context>

<pallas_src>
import functools

import jax
import jax.numpy as jnp
import numpy as np
from jax.experimental import pallas as pl
from jax.experimental.pallas import tpu as pltpu

_BN_EPS = 1e-5
_LAYER_ORDER = ("a", "b1", "b2", "b3", "c1", "c2", "c3", "c4")


# ----------------------------------------------------------------------------
# Fused Inception kernel (one batch element per grid step)
# ----------------------------------------------------------------------------
def _inception_kernel(H, W, layer_cfgs, x_ref, w_ref, aff_ref, mask_ref, out_ref):
    """Entire Inception block for one image.

    x_ref:    (1, C, H*W)                 input feature map, spatial flattened on lanes
    w_ref:    (L, COUT_MAX, K_MAX)        per-layer conv weights, (ky,kx)-major / cin-minor
    aff_ref:  (L, C_MAX, 3)               per-layer [BN scale, BN shift, conv bias] columns
    mask_ref: (9, 1, H*W)                 per-3x3-tap boundary validity masks (f32 0/1)
    out_ref:  (1, C, H*W)
    """
    HW = H * W
    x = x_ref[0].astype(jnp.float32)                                   # (C, HW)

    # Hoist the 9 per-tap boundary masks once (shared by every 3x3 layer).
    mask_rows = [mask_ref[t] for t in range(9)]                        # each (1, HW)

    def conv_layer(inp, lidx):
        cin, cout, k = layer_cfgs[lidx]
        assert k in (1, 3)
        pad = (k - 1) // 2

        aff = aff_ref[lidx].astype(jnp.float32)                        # (C_MAX, 3)
        scale = aff[:cin, 0:1]                                         # (cin, 1)
        shift = aff[:cin, 1:2]
        bias = aff[:cout, 2:3]                                         # (cout, 1)

        # BatchNorm (inference, folded) + TanhActivation: tanh(x/3)*3
        act = jnp.tanh((inp * scale + shift) * (1.0 / 3.0)) * 3.0      # (cin, HW)

        if k == 1:
            cols = act                                                 # (cin, HW)
        else:
            # im2col on the flat spatial axis: circular shift via aligned self-concat
            # + static lane slice, then zero invalid (out-of-image) taps with the
            # precomputed masks.  One big-K matmul instead of nine K=cin matmuls.
            doubled = jnp.concatenate([act, act], axis=1)              # (cin, 2*HW)
            taps = []
            for ky in range(k):
                for kx in range(k):
                    dy, dx = ky - pad, kx - pad
                    s = dy * W + dx
                    t = ky * k + kx
                    if s == 0:
                        taps.append(act)
                    else:
                        start = s % HW
                        shifted = doubled[:, start:start + HW]         # (cin, HW)
                        taps.append(shifted * mask_rows[t])
            cols = jnp.concatenate(taps, axis=0)                       # (k*k*cin, HW)

        wl = w_ref[lidx].astype(jnp.float32)[:cout, :k * k * cin]      # (cout, k*k*cin)
        out = jnp.dot(wl, cols, preferred_element_type=jnp.float32)    # (cout, HW)
        return out + bias

    a_out = conv_layer(x, 0)
    b_out = conv_layer(conv_layer(conv_layer(x, 1), 2), 3)
    c_out = conv_layer(conv_layer(conv_layer(conv_layer(x, 4), 5), 6), 7)

    # SummationLayer([input, A, B, C]) — balanced pairwise tree in f32.
    total = (x + a_out) + (b_out + c_out)
    out_ref[0] = total.astype(out_ref.dtype)


# ----------------------------------------------------------------------------
# Host wrapper: pack parameters, precompute masks, launch the fused kernel
# ----------------------------------------------------------------------------
def inception_layer_pallas(x_nchw, params):
    N, C, H, W = x_nchw.shape
    HW = H * W

    layer_cfgs = []
    for name in _LAYER_ORDER:
        p = params[name]
        cout, cin = p["w"].shape[0], p["w"].shape[1]
        layer_cfgs.append((cin, cout, int(p["k"])))
    layer_cfgs = tuple(layer_cfgs)
    L = len(layer_cfgs)

    cout_max = max(cfg[1] for cfg in layer_cfgs)
    kdim_max = max(cfg[0] * cfg[2] * cfg[2] for cfg in layer_cfgs)
    c_max = max(max(cfg[0], cfg[1]) for cfg in layer_cfgs)

    # Packed weights: w2d[co, (ky*k+kx)*cin + ci] = w[co, ci, ky, kx]
    wstack = jnp.zeros((L, cout_max, kdim_max), jnp.float32)
    affstack = jnp.zeros((L, c_max, 3), jnp.float32)
    for l, name in enumerate(_LAYER_ORDER):
        p = params[name]
        cin, cout, k = layer_cfgs[l]
        w2d = jnp.transpose(p["w"].astype(jnp.float32), (0, 2, 3, 1)).reshape(
            cout, k * k * cin)
        wstack = wstack.at[l, :cout, :k * k * cin].set(w2d)

        inv_std = 1.0 / jnp.sqrt(p["var"].astype(jnp.float32) + _BN_EPS)
        scale = p["gamma"].astype(jnp.float32) * inv_std
        shift = p["beta"].astype(jnp.float32) - p["mean"].astype(jnp.float32) * scale
        affstack = affstack.at[l, :cin, 0].set(scale)
        affstack = affstack.at[l, :cin, 1].set(shift)
        affstack = affstack.at[l, :cout, 2].set(p["b"].astype(jnp.float32))

    # Per-tap 3x3 'same'-padding validity masks on the flattened spatial axis
    # (precomputed on host so the kernel needs no iota / integer div/mod).
    ys, xs = np.meshgrid(np.arange(H), np.arange(W), indexing="ij")
    rows = []
    for ky in range(3):
        for kx in range(3):
            dy, dx = ky - 1, kx - 1
            valid = ((ys + dy >= 0) & (ys + dy < H) &
                     (xs + dx >= 0) & (xs + dx < W))
            rows.append(valid.reshape(1, HW).astype(np.float32))
    masks = jnp.asarray(np.stack(rows, axis=0))                         # (9, 1, HW)

    # NCHW -> (N, C, H*W): contiguous row-major, so this reshape is free.
    x_flat = x_nchw.reshape(N, C, HW)

    kernel = functools.partial(_inception_kernel, H, W, layer_cfgs)
    out_flat = pl.pallas_call(
        kernel,
        out_shape=jax.ShapeDtypeStruct((N, C, HW), x_nchw.dtype),
        grid=(N,),
        in_specs=[
            pl.BlockSpec((1, C, HW), lambda n: (n, 0, 0)),
            pl.BlockSpec((L, cout_max, kdim_max), lambda n: (0, 0, 0)),
            pl.BlockSpec((L, c_max, 3), lambda n: (0, 0, 0)),
            pl.BlockSpec((9, 1, HW), lambda n: (0, 0, 0)),
        ],
        out_specs=pl.BlockSpec((1, C, HW), lambda n: (n, 0, 0)),
        compiler_params=pltpu.CompilerParams(
            dimension_semantics=("parallel",),
            vmem_limit_bytes=32 * 1024 * 1024,
        ),
    )(x_flat, wstack, affstack, masks)

    return out_flat.reshape(N, C, H, W)


# ----------------------------------------------------------------------------
# Pure-JAX reference (mirrors the PyTorch module, BN in inference mode)
# ----------------------------------------------------------------------------
def _conv_layer_ref(x_nchw, p):
    scale = p["gamma"] / jnp.sqrt(p["var"] + _BN_EPS)
    shift = p["beta"] - p["mean"] * scale
    pre = x_nchw * scale[None, :, None, None] + shift[None, :, None, None]
    act = jnp.tanh(pre / 3.0) * 3.0
    k = int(p["k"])
    pad = (k - 1) // 2
    out = jax.lax.conv_general_dilated(
        act, p["w"], window_strides=(1, 1),
        padding=((pad, pad), (pad, pad)),
        dimension_numbers=("NCHW", "OIHW", "NCHW"))
    return out + p["b"][None, :, None, None]


def inception_layer_ref(x_nchw, params):
    a = _conv_layer_ref(x_nchw, params["a"])
    b = _conv_layer_ref(_conv_layer_ref(_conv_layer_ref(x_nchw, params["b1"]),
                                        params["b2"]), params["b3"])
    c = _conv_layer_ref(_conv_layer_ref(_conv_layer_ref(
        _conv_layer_ref(x_nchw, params["c1"]), params["c2"]), params["c3"]),
        params["c4"])
    stacked = jnp.stack([x_nchw, a, b, c], axis=-1)
    return stacked.sum(axis=-1)


# ----------------------------------------------------------------------------
# Parameter construction
# ----------------------------------------------------------------------------
def init_conv_layer_params(key, cin, cout, k):
    kw, kb, kg, kbe, km, kv = jax.random.split(key, 6)
    return dict(
        w=0.2 * jax.random.normal(kw, (cout, cin, k, k), jnp.float32),   # torch OIHW
        b=0.1 * jax.random.normal(kb, (cout,), jnp.float32),
        gamma=1.0 + 0.1 * jax.random.normal(kg, (cin,), jnp.float32),
        beta=0.1 * jax.random.normal(kbe, (cin,), jnp.float32),
        mean=0.1 * jax.random.normal(km, (cin,), jnp.float32),
        var=jax.random.uniform(kv, (cin,), jnp.float32, 0.5, 1.5),
        k=k,
    )


if __name__ == "__main__":
    key = jax.random.PRNGKey(0)
    k_x, k_p = jax.random.split(key)

    N, C, H, W = 2, 4, 16, 16     # small demo shapes
    F = 8                         # num_intermediate_filters

    x = jax.random.normal(k_x, (N, C, H, W), jnp.float32)
    keys = jax.random.split(k_p, 8)
    params = {
        "a":  init_conv_layer_params(keys[0], C, C, 1),
        "b1": init_conv_layer_params(keys[1], C, F, 1),
        "b2": init_conv_layer_params(keys[2], F, F, 3),
        "b3": init_conv_layer_params(keys[3], F, C, 1),
        "c1": init_conv_layer_params(keys[4], C, F, 1),
        "c2": init_conv_layer_params(keys[5], F, F, 3),
        "c3": init_conv_layer_params(keys[6], F, F, 3),
        "c4": init_conv_layer_params(keys[7], F, C, 1),
    }

    out = jax.block_until_ready(inception_layer_pallas(x, params))
    ref = inception_layer_ref(x, params)

    assert out.shape == ref.shape == (N, C, H, W), (out.shape, ref.shape)
    assert out.dtype == ref.dtype
    max_err = float(jnp.max(jnp.abs(out - ref)))
    assert jnp.allclose(out, ref, atol=1e-3, rtol=1e-3), f"mismatch, max_err={max_err}"

    print("KERNEL_OK")
</pallas_src>

<mosaic_0001>
module attributes {stable_mosaic.version = 11 : i64} {
  func.func @_inception_kernel(%arg0: i32, %arg1: memref<1x4x256xf32, #tpu.memory_space<vmem>>, %arg2: memref<8x8x72xf32, #tpu.memory_space<vmem>>, %arg3: memref<8x8x3xf32, #tpu.memory_space<vmem>>, %arg4: memref<9x1x256xf32, #tpu.memory_space<vmem>>, %arg5: memref<1x4x256xf32, #tpu.memory_space<vmem>>) attributes {dimension_semantics = [#tpu.dimension_semantics<parallel>], iteration_bounds = array<i64: 2>, scalar_prefetch = 0 : i64, scratch_operands = 0 : i64, tpu.core_type = #tpu.core_type<tc>, window_params = [{transform_indices = @transform_0, window_bounds = array<i64: 1, 4, 256>}, {pipeline_mode = #tpu.pipeline_mode<synchronous>, transform_indices = @transform_1, window_bounds = array<i64: 8, 8, 72>}, {pipeline_mode = #tpu.pipeline_mode<synchronous>, transform_indices = @transform_2, window_bounds = array<i64: 8, 8, 3>}, {pipeline_mode = #tpu.pipeline_mode<synchronous>, transform_indices = @transform_3, window_bounds = array<i64: 9, 1, 256>}, {transform_indices = @transform_4, window_bounds = array<i64: 1, 4, 256>}]} {
    %c0 = arith.constant 0 : index
    %c0_0 = arith.constant 0 : index
    %c0_1 = arith.constant 0 : index
    %0 = vector.load %arg1[%c0, %c0_0, %c0_1] : memref<1x4x256xf32, #tpu.memory_space<vmem>>, vector<1x4x256xf32>
    %1 = vector.shape_cast %0 : vector<1x4x256xf32> to vector<4x256xf32>
    %c0_2 = arith.constant 0 : index
    %c0_3 = arith.constant 0 : index
    %c0_4 = arith.constant 0 : index
    %2 = vector.load %arg4[%c0_2, %c0_3, %c0_4] : memref<9x1x256xf32, #tpu.memory_space<vmem>>, vector<1x1x256xf32>
    %3 = vector.shape_cast %2 : vector<1x1x256xf32> to vector<1x256xf32>
    %c1 = arith.constant 1 : index
    %c0_5 = arith.constant 0 : index
    %c0_6 = arith.constant 0 : index
    %4 = vector.load %arg4[%c1, %c0_5, %c0_6] : memref<9x1x256xf32, #tpu.memory_space<vmem>>, vector<1x1x256xf32>
    %5 = vector.shape_cast %4 : vector<1x1x256xf32> to vector<1x256xf32>
    %c2 = arith.constant 2 : index
    %c0_7 = arith.constant 0 : index
    %c0_8 = arith.constant 0 : index
    %6 = vector.load %arg4[%c2, %c0_7, %c0_8] : memref<9x1x256xf32, #tpu.memory_space<vmem>>, vector<1x1x256xf32>
    %7 = vector.shape_cast %6 : vector<1x1x256xf32> to vector<1x256xf32>
    %c3 = arith.constant 3 : index
    %c0_9 = arith.constant 0 : index
    %c0_10 = arith.constant 0 : index
    %8 = vector.load %arg4[%c3, %c0_9, %c0_10] : memref<9x1x256xf32, #tpu.memory_space<vmem>>, vector<1x1x256xf32>
    %9 = vector.shape_cast %8 : vector<1x1x256xf32> to vector<1x256xf32>
    %c5 = arith.constant 5 : index
    %c0_11 = arith.constant 0 : index
    %c0_12 = arith.constant 0 : index
    %10 = vector.load %arg4[%c5, %c0_11, %c0_12] : memref<9x1x256xf32, #tpu.memory_space<vmem>>, vector<1x1x256xf32>
    %11 = vector.shape_cast %10 : vector<1x1x256xf32> to vector<1x256xf32>
    %c6 = arith.constant 6 : index
    %c0_13 = arith.constant 0 : index
    %c0_14 = arith.constant 0 : index
    %12 = vector.load %arg4[%c6, %c0_13, %c0_14] : memref<9x1x256xf32, #tpu.memory_space<vmem>>, vector<1x1x256xf32>
    %13 = vector.shape_cast %12 : vector<1x1x256xf32> to vector<1x256xf32>
    %c7 = arith.constant 7 : index
    %c0_15 = arith.constant 0 : index
    %c0_16 = arith.constant 0 : index
    %14 = vector.load %arg4[%c7, %c0_15, %c0_16] : memref<9x1x256xf32, #tpu.memory_space<vmem>>, vector<1x1x256xf32>
    %15 = vector.shape_cast %14 : vector<1x1x256xf32> to vector<1x256xf32>
    %c8 = arith.constant 8 : index
    %c0_17 = arith.constant 0 : index
    %c0_18 = arith.constant 0 : index
    %16 = vector.load %arg4[%c8, %c0_17, %c0_18] : memref<9x1x256xf32, #tpu.memory_space<vmem>>, vector<1x1x256xf32>
    %17 = vector.shape_cast %16 : vector<1x1x256xf32> to vector<1x256xf32>
    %c0_19 = arith.constant 0 : index
    %c0_20 = arith.constant 0 : index
    %c0_21 = arith.constant 0 : index
    %18 = vector.load %arg3[%c0_19, %c0_20, %c0_21] : memref<8x8x3xf32, #tpu.memory_space<vmem>>, vector<1x8x3xf32>
    %19 = vector.shape_cast %18 : vector<1x8x3xf32> to vector<8x3xf32>
    %20 = vector.extract_strided_slice %19 {offsets = [0, 0], sizes = [4, 1], strides = [1, 1]} : vector<8x3xf32> to vector<4x1xf32>
    %21 = vector.extract_strided_slice %19 {offsets = [0, 1], sizes = [4, 1], strides = [1, 1]} : vector<8x3xf32> to vector<4x1xf32>
    %22 = vector.extract_strided_slice %19 {offsets = [0, 2], sizes = [4, 1], strides = [1, 1]} : vector<8x3xf32> to vector<4x1xf32>
    %23 = vector.broadcast %20 : vector<4x1xf32> to vector<4x256xf32>
    %24 = arith.mulf %1, %23 : vector<4x256xf32>
    %25 = vector.broadcast %21 : vector<4x1xf32> to vector<4x256xf32>
    %26 = arith.addf %24, %25 : vector<4x256xf32>
    %cst = arith.constant 0.333333343 : f32
    %27 = vector.broadcast %cst : f32 to vector<4x256xf32>
    %28 = arith.mulf %26, %27 : vector<4x256xf32>
    %29 = math.tanh %28 : vector<4x256xf32>
    %cst_22 = arith.constant 3.000000e+00 : f32
    %30 = vector.broadcast %cst_22 : f32 to vector<4x256xf32>
    %31 = arith.mulf %29, %30 : vector<4x256xf32>
    %c0_23 = arith.constant 0 : index
    %c0_24 = arith.constant 0 : index
    %c0_25 = arith.constant 0 : index
    %32 = vector.load %arg2[%c0_23, %c0_24, %c0_25] : memref<8x8x72xf32, #tpu.memory_space<vmem>>, vector<1x8x72xf32>
    %33 = vector.shape_cast %32 : vector<1x8x72xf32> to vector<8x72xf32>
    %34 = vector.extract_strided_slice %33 {offsets = [0, 0], sizes = [4, 4], strides = [1, 1]} : vector<8x72xf32> to vector<4x4xf32>
    %cst_26 = arith.constant dense<0.000000e+00> : vector<4x256xf32>
    %35 = tpu.matmul %34, %31, %cst_26 {dimension_numbers = #tpu.dot_dimension_numbers<[1], [0], [0], [1], [0, 0, 1, 1], [], []>} : vector<4x4xf32>, vector<4x256xf32>, vector<4x256xf32> -> vector<4x256xf32>
    %36 = vector.broadcast %22 : vector<4x1xf32> to vector<4x256xf32>
    %37 = arith.addf %35, %36 : vector<4x256xf32>
    %c1_27 = arith.constant 1 : index
    %c0_28 = arith.constant 0 : index
    %c0_29 = arith.constant 0 : index
    %38 = vector.load %arg3[%c1_27, %c0_28, %c0_29] : memref<8x8x3xf32, #tpu.memory_space<vmem>>, vector<1x8x3xf32>
    %39 = vector.shape_cast %38 : vector<1x8x3xf32> to vector<8x3xf32>
    %40 = vector.extract_strided_slice %39 {offsets = [0, 0], sizes = [4, 1], strides = [1, 1]} : vector<8x3xf32> to vector<4x1xf32>
    %41 = vector.extract_strided_slice %39 {offsets = [0, 1], sizes = [4, 1], strides = [1, 1]} : vector<8x3xf32> to vector<4x1xf32>
    %42 = vector.extract_strided_slice %39 {offsets = [0, 2], sizes = [8, 1], strides = [1, 1]} : vector<8x3xf32> to vector<8x1xf32>
    %43 = vector.broadcast %40 : vector<4x1xf32> to vector<4x256xf32>
    %44 = arith.mulf %1, %43 : vector<4x256xf32>
    %45 = vector.broadcast %41 : vector<4x1xf32> to vector<4x256xf32>
    %46 = arith.addf %44, %45 : vector<4x256xf32>
    %cst_30 = arith.constant 0.333333343 : f32
    %47 = vector.broadcast %cst_30 : f32 to vector<4x256xf32>
    %48 = arith.mulf %46, %47 : vector<4x256xf32>
    %49 = math.tanh %48 : vector<4x256xf32>
    %cst_31 = arith.constant 3.000000e+00 : f32
    %50 = vector.broadcast %cst_31 : f32 to vector<4x256xf32>
    %51 = arith.mulf %49, %50 : vector<4x256xf32>
    %c1_32 = arith.constant 1 : index
    %c0_33 = arith.constant 0 : index
    %c0_34 = arith.constant 0 : index
    %52 = vector.load %arg2[%c1_32, %c0_33, %c0_34] : memref<8x8x72xf32, #tpu.memory_space<vmem>>, vector<1x8x72xf32>
    %53 = vector.shape_cast %52 : vector<1x8x72xf32> to vector<8x72xf32>
    %54 = vector.extract_strided_slice %53 {offsets = [0, 0], sizes = [8, 4], strides = [1, 1]} : vector<8x72xf32> to vector<8x4xf32>
    %cst_35 = arith.constant dense<0.000000e+00> : vector<8x256xf32>
    %55 = tpu.matmul %54, %51, %cst_35 {dimension_numbers = #tpu.dot_dimension_numbers<[1], [0], [0], [1], [0, 0, 1, 1], [], []>} : vector<8x4xf32>, vector<4x256xf32>, vector<8x256xf32> -> vector<8x256xf32>
    %56 = vector.broadcast %42 : vector<8x1xf32> to vector<8x256xf32>
    %57 = arith.addf %55, %56 : vector<8x256xf32>
    %c2_36 = arith.constant 2 : index
    %c0_37 = arith.constant 0 : index
    %c0_38 = arith.constant 0 : index
    %58 = vector.load %arg3[%c2_36, %c0_37, %c0_38] : memref<8x8x3xf32, #tpu.memory_space<vmem>>, vector<1x8x3xf32>
    %59 = vector.shape_cast %58 : vector<1x8x3xf32> to vector<8x3xf32>
    %60 = vector.extract_strided_slice %59 {offsets = [0, 0], sizes = [8, 1], strides = [1, 1]} : vector<8x3xf32> to vector<8x1xf32>
    %61 = vector.extract_strided_slice %59 {offsets = [0, 1], sizes = [8, 1], strides = [1, 1]} : vector<8x3xf32> to vector<8x1xf32>
    %62 = vector.extract_strided_slice %59 {offsets = [0, 2], sizes = [8, 1], strides = [1, 1]} : vector<8x3xf32> to vector<8x1xf32>
    %63 = vector.broadcast %60 : vector<8x1xf32> to vector<8x256xf32>
    %64 = arith.mulf %57, %63 : vector<8x256xf32>
    %65 = vector.broadcast %61 : vector<8x1xf32> to vector<8x256xf32>
    %66 = arith.addf %64, %65 : vector<8x256xf32>
    %cst_39 = arith.constant 0.333333343 : f32
    %67 = vector.broadcast %cst_39 : f32 to vector<8x256xf32>
    %68 = arith.mulf %66, %67 : vector<8x256xf32>
    %69 = math.tanh %68 : vector<8x256xf32>
    %cst_40 = arith.constant 3.000000e+00 : f32
    %70 = vector.broadcast %cst_40 : f32 to vector<8x256xf32>
    %71 = arith.mulf %69, %70 : vector<8x256xf32>
    %72 = tpu.concatenate %71, %71 in 1 : vector<8x256xf32>, vector<8x256xf32> -> vector<8x512xf32>
    %73 = vector.extract_strided_slice %72 {offsets = [0, 239], sizes = [8, 256], strides = [1, 1]} : vector<8x512xf32> to vector<8x256xf32>
    %74 = vector.broadcast %3 : vector<1x256xf32> to vector<8x256xf32>
    %75 = arith.mulf %73, %74 : vector<8x256xf32>
    %76 = vector.extract_strided_slice %72 {offsets = [0, 240], sizes = [8, 256], strides = [1, 1]} : vector<8x512xf32> to vector<8x256xf32>
    %77 = vector.broadcast %5 : vector<1x256xf32> to vector<8x256xf32>
    %78 = arith.mulf %76, %77 : vector<8x256xf32>
    %79 = vector.extract_strided_slice %72 {offsets = [0, 241], sizes = [8, 256], strides = [1, 1]} : vector<8x512xf32> to vector<8x256xf32>
    %80 = vector.broadcast %7 : vector<1x256xf32> to vector<8x256xf32>
    %81 = arith.mulf %79, %80 : vector<8x256xf32>
    %82 = vector.extract_strided_slice %72 {offsets = [0, 255], sizes = [8, 256], strides = [1, 1]} : vector<8x512xf32> to vector<8x256xf32>
    %83 = vector.broadcast %9 : vector<1x256xf32> to vector<8x256xf32>
    %84 = arith.mulf %82, %83 : vector<8x256xf32>
    %85 = vector.extract_strided_slice %72 {offsets = [0, 1], sizes = [8, 256], strides = [1, 1]} : vector<8x512xf32> to vector<8x256xf32>
    %86 = vector.broadcast %11 : vector<1x256xf32> to vector<8x256xf32>
    %87 = arith.mulf %85, %86 : vector<8x256xf32>
    %88 = vector.extract_strided_slice %72 {offsets = [0, 15], sizes = [8, 256], strides = [1, 1]} : vector<8x512xf32> to vector<8x256xf32>
    %89 = vector.broadcast %13 : vector<1x256xf32> to vector<8x256xf32>
    %90 = arith.mulf %88, %89 : vector<8x256xf32>
    %91 = vector.extract_strided_slice %72 {offsets = [0, 16], sizes = [8, 256], strides = [1, 1]} : vector<8x512xf32> to vector<8x256xf32>
    %92 = vector.broadcast %15 : vector<1x256xf32> to vector<8x256xf32>
    %93 = arith.mulf %91, %92 : vector<8x256xf32>
    %94 = vector.extract_strided_slice %72 {offsets = [0, 17], sizes = [8, 256], strides = [1, 1]} : vector<8x512xf32> to vector<8x256xf32>
    %95 = vector.broadcast %17 : vector<1x256xf32> to vector<8x256xf32>
    %96 = arith.mulf %94, %95 : vector<8x256xf32>
    %97 = tpu.concatenate %75, %78, %81, %84, %71, %87, %90, %93, %96 in 0 : vector<8x256xf32>, vector<8x256xf32>, vector<8x256xf32>, vector<8x256xf32>, vector<8x256xf32>, vector<8x256xf32>, vector<8x256xf32>, vector<8x256xf32>, vector<8x256xf32> -> vector<72x256xf32>
    %c2_41 = arith.constant 2 : index
    %c0_42 = arith.constant 0 : index
    %c0_43 = arith.constant 0 : index
    %98 = vector.load %arg2[%c2_41, %c0_42, %c0_43] : memref<8x8x72xf32, #tpu.memory_space<vmem>>, vector<1x8x72xf32>
    %99 = vector.shape_cast %98 : vector<1x8x72xf32> to vector<8x72xf32>
    %cst_44 = arith.constant dense<0.000000e+00> : vector<8x256xf32>
    %100 = tpu.matmul %99, %97, %cst_44 {dimension_numbers = #tpu.dot_dimension_numbers<[1], [0], [0], [1], [0, 0, 1, 1], [], []>} : vector<8x72xf32>, vector<72x256xf32>, vector<8x256xf32> -> vector<8x256xf32>
    %101 = vector.broadcast %62 : vector<8x1xf32> to vector<8x256xf32>
    %102 = arith.addf %100, %101 : vector<8x256xf32>
    %c3_45 = arith.constant 3 : index
    %c0_46 = arith.constant 0 : index
    %c0_47 = arith.constant 0 : index
    %103 = vector.load %arg3[%c3_45, %c0_46, %c0_47] : memref<8x8x3xf32, #tpu.memory_space<vmem>>, vector<1x8x3xf32>
    %104 = vector.shape_cast %103 : vector<1x8x3xf32> to vector<8x3xf32>
    %105 = vector.extract_strided_slice %104 {offsets = [0, 0], sizes = [8, 1], strides = [1, 1]} : vector<8x3xf32> to vector<8x1xf32>
    %106 = vector.extract_strided_slice %104 {offsets = [0, 1], sizes = [8, 1], strides = [1, 1]} : vector<8x3xf32> to vector<8x1xf32>
    %107 = vector.extract_strided_slice %104 {offsets = [0, 2], sizes = [4, 1], strides = [1, 1]} : vector<8x3xf32> to vector<4x1xf32>
    %108 = vector.broadcast %105 : vector<8x1xf32> to vector<8x256xf32>
    %109 = arith.mulf %102, %108 : vector<8x256xf32>
    %110 = vector.broadcast %106 : vector<8x1xf32> to vector<8x256xf32>
    %111 = arith.addf %109, %110 : vector<8x256xf32>
    %cst_48 = arith.constant 0.333333343 : f32
    %112 = vector.broadcast %cst_48 : f32 to vector<8x256xf32>
    %113 = arith.mulf %111, %112 : vector<8x256xf32>
    %114 = math.tanh %113 : vector<8x256xf32>
    %cst_49 = arith.constant 3.000000e+00 : f32
    %115 = vector.broadcast %cst_49 : f32 to vector<8x256xf32>
    %116 = arith.mulf %114, %115 : vector<8x256xf32>
    %c3_50 = arith.constant 3 : index
    %c0_51 = arith.constant 0 : index
    %c0_52 = arith.constant 0 : index
    %117 = vector.load %arg2[%c3_50, %c0_51, %c0_52] : memref<8x8x72xf32, #tpu.memory_space<vmem>>, vector<1x8x72xf32>
    %118 = vector.shape_cast %117 : vector<1x8x72xf32> to vector<8x72xf32>
    %119 = vector.extract_strided_slice %118 {offsets = [0, 0], sizes = [4, 8], strides = [1, 1]} : vector<8x72xf32> to vector<4x8xf32>
    %cst_53 = arith.constant dense<0.000000e+00> : vector<4x256xf32>
    %120 = tpu.matmul %119, %116, %cst_53 {dimension_numbers = #tpu.dot_dimension_numbers<[1], [0], [0], [1], [0, 0, 1, 1], [], []>} : vector<4x8xf32>, vector<8x256xf32>, vector<4x256xf32> -> vector<4x256xf32>
    %121 = vector.broadcast %107 : vector<4x1xf32> to vector<4x256xf32>
    %122 = arith.addf %120, %121 : vector<4x256xf32>
    %c4 = arith.constant 4 : index
    %c0_54 = arith.constant 0 : index
    %c0_55 = arith.constant 0 : index
    %123 = vector.load %arg3[%c4, %c0_54, %c0_55] : memref<8x8x3xf32, #tpu.memory_space<vmem>>, vector<1x8x3xf32>
    %124 = vector.shape_cast %123 : vector<1x8x3xf32> to vector<8x3xf32>
    %125 = vector.extract_strided_slice %124 {offsets = [0, 0], sizes = [4, 1], strides = [1, 1]} : vector<8x3xf32> to vector<4x1xf32>
    %126 = vector.extract_strided_slice %124 {offsets = [0, 1], sizes = [4, 1], strides = [1, 1]} : vector<8x3xf32> to vector<4x1xf32>
    %127 = vector.extract_strided_slice %124 {offsets = [0, 2], sizes = [8, 1], strides = [1, 1]} : vector<8x3xf32> to vector<8x1xf32>
    %128 = vector.broadcast %125 : vector<4x1xf32> to vector<4x256xf32>
    %129 = arith.mulf %1, %128 : vector<4x256xf32>
    %130 = vector.broadcast %126 : vector<4x1xf32> to vector<4x256xf32>
    %131 = arith.addf %129, %130 : vector<4x256xf32>
    %cst_56 = arith.constant 0.333333343 : f32
    %132 = vector.broadcast %cst_56 : f32 to vector<4x256xf32>
    %133 = arith.mulf %131, %132 : vector<4x256xf32>
    %134 = math.tanh %133 : vector<4x256xf32>
    %cst_57 = arith.constant 3.000000e+00 : f32
    %135 = vector.broadcast %cst_57 : f32 to vector<4x256xf32>
    %136 = arith.mulf %134, %135 : vector<4x256xf32>
    %c4_58 = arith.constant 4 : index
    %c0_59 = arith.constant 0 : index
    %c0_60 = arith.constant 0 : index
    %137 = vector.load %arg2[%c4_58, %c0_59, %c0_60] : memref<8x8x72xf32, #tpu.memory_space<vmem>>, vector<1x8x72xf32>
    %138 = vector.shape_cast %137 : vector<1x8x72xf32> to vector<8x72xf32>
    %139 = vector.extract_strided_slice %138 {offsets = [0, 0], sizes = [8, 4], strides = [1, 1]} : vector<8x72xf32> to vector<8x4xf32>
    %cst_61 = arith.constant dense<0.000000e+00> : vector<8x256xf32>
    %140 = tpu.matmul %139, %136, %cst_61 {dimension_numbers = #tpu.dot_dimension_numbers<[1], [0], [0], [1], [0, 0, 1, 1], [], []>} : vector<8x4xf32>, vector<4x256xf32>, vector<8x256xf32> -> vector<8x256xf32>
    %141 = vector.broadcast %127 : vector<8x1xf32> to vector<8x256xf32>
    %142 = arith.addf %140, %141 : vector<8x256xf32>
    %c5_62 = arith.constant 5 : index
    %c0_63 = arith.constant 0 : index
    %c0_64 = arith.constant 0 : index
    %143 = vector.load %arg3[%c5_62, %c0_63, %c0_64] : memref<8x8x3xf32, #tpu.memory_space<vmem>>, vector<1x8x3xf32>
    %144 = vector.shape_cast %143 : vector<1x8x3xf32> to vector<8x3xf32>
    %145 = vector.extract_strided_slice %144 {offsets = [0, 0], sizes = [8, 1], strides = [1, 1]} : vector<8x3xf32> to vector<8x1xf32>
    %146 = vector.extract_strided_slice %144 {offsets = [0, 1], sizes = [8, 1], strides = [1, 1]} : vector<8x3xf32> to vector<8x1xf32>
    %147 = vector.extract_strided_slice %144 {offsets = [0, 2], sizes = [8, 1], strides = [1, 1]} : vector<8x3xf32> to vector<8x1xf32>
    %148 = vector.broadcast %145 : vector<8x1xf32> to vector<8x256xf32>
    %149 = arith.mulf %142, %148 : vector<8x256xf32>
    %150 = vector.broadcast %146 : vector<8x1xf32> to vector<8x256xf32>
    %151 = arith.addf %149, %150 : vector<8x256xf32>
    %cst_65 = arith.constant 0.333333343 : f32
    %152 = vector.broadcast %cst_65 : f32 to vector<8x256xf32>
    %153 = arith.mulf %151, %152 : vector<8x256xf32>
    %154 = math.tanh %153 : vector<8x256xf32>
    %cst_66 = arith.constant 3.000000e+00 : f32
    %155 = vector.broadcast %cst_66 : f32 to vector<8x256xf32>
    %156 = arith.mulf %154, %155 : vector<8x256xf32>
    %157 = tpu.concatenate %156, %156 in 1 : vector<8x256xf32>, vector<8x256xf32> -> vector<8x512xf32>
    %158 = vector.extract_strided_slice %157 {offsets = [0, 239], sizes = [8, 256], strides = [1, 1]} : vector<8x512xf32> to vector<8x256xf32>
    %159 = vector.broadcast %3 : vector<1x256xf32> to vector<8x256xf32>
    %160 = arith.mulf %158, %159 : vector<8x256xf32>
    %161 = vector.extract_strided_slice %157 {offsets = [0, 240], sizes = [8, 256], strides = [1, 1]} : vector<8x512xf32> to vector<8x256xf32>
    %162 = vector.broadcast %5 : vector<1x256xf32> to vector<8x256xf32>
    %163 = arith.mulf %161, %162 : vector<8x256xf32>
    %164 = vector.extract_strided_slice %157 {offsets = [0, 241], sizes = [8, 256], strides = [1, 1]} : vector<8x512xf32> to vector<8x256xf32>
    %165 = vector.broadcast %7 : vector<1x256xf32> to vector<8x256xf32>
    %166 = arith.mulf %164, %165 : vector<8x256xf32>
    %167 = vector.extract_strided_slice %157 {offsets = [0, 255], sizes = [8, 256], strides = [1, 1]} : vector<8x512xf32> to vector<8x256xf32>
    %168 = vector.broadcast %9 : vector<1x256xf32> to vector<8x256xf32>
    %169 = arith.mulf %167, %168 : vector<8x256xf32>
    %170 = vector.extract_strided_slice %157 {offsets = [0, 1], sizes = [8, 256], strides = [1, 1]} : vector<8x512xf32> to vector<8x256xf32>
    %171 = vector.broadcast %11 : vector<1x256xf32> to vector<8x256xf32>
    %172 = arith.mulf %170, %171 : vector<8x256xf32>
    %173 = vector.extract_strided_slice %157 {offsets = [0, 15], sizes = [8, 256], strides = [1, 1]} : vector<8x512xf32> to vector<8x256xf32>
    %174 = vector.broadcast %13 : vector<1x256xf32> to vector<8x256xf32>
    %175 = arith.mulf %173, %174 : vector<8x256xf32>
    %176 = vector.extract_strided_slice %157 {offsets = [0, 16], sizes = [8, 256], strides = [1, 1]} : vector<8x512xf32> to vector<8x256xf32>
    %177 = vector.broadcast %15 : vector<1x256xf32> to vector<8x256xf32>
    %178 = arith.mulf %176, %177 : vector<8x256xf32>
    %179 = vector.extract_strided_slice %157 {offsets = [0, 17], sizes = [8, 256], strides = [1, 1]} : vector<8x512xf32> to vector<8x256xf32>
    %180 = vector.broadcast %17 : vector<1x256xf32> to vector<8x256xf32>
    %181 = arith.mulf %179, %180 : vector<8x256xf32>
    %182 = tpu.concatenate %160, %163, %166, %169, %156, %172, %175, %178, %181 in 0 : vector<8x256xf32>, vector<8x256xf32>, vector<8x256xf32>, vector<8x256xf32>, vector<8x256xf32>, vector<8x256xf32>, vector<8x256xf32>, vector<8x256xf32>, vector<8x256xf32> -> vector<72x256xf32>
    %c5_67 = arith.constant 5 : index
    %c0_68 = arith.constant 0 : index
    %c0_69 = arith.constant 0 : index
    %183 = vector.load %arg2[%c5_67, %c0_68, %c0_69] : memref<8x8x72xf32, #tpu.memory_space<vmem>>, vector<1x8x72xf32>
    %184 = vector.shape_cast %183 : vector<1x8x72xf32> to vector<8x72xf32>
    %cst_70 = arith.constant dense<0.000000e+00> : vector<8x256xf32>
    %185 = tpu.matmul %184, %182, %cst_70 {dimension_numbers = #tpu.dot_dimension_numbers<[1], [0], [0], [1], [0, 0, 1, 1], [], []>} : vector<8x72xf32>, vector<72x256xf32>, vector<8x256xf32> -> vector<8x256xf32>
    %186 = vector.broadcast %147 : vector<8x1xf32> to vector<8x256xf32>
    %187 = arith.addf %185, %186 : vector<8x256xf32>
    %c6_71 = arith.constant 6 : index
    %c0_72 = arith.constant 0 : index
    %c0_73 = arith.constant 0 : index
    %188 = vector.load %arg3[%c6_71, %c0_72, %c0_73] : memref<8x8x3xf32, #tpu.memory_space<vmem>>, vector<1x8x3xf32>
    %189 = vector.shape_cast %188 : vector<1x8x3xf32> to vector<8x3xf32>
    %190 = vector.extract_strided_slice %189 {offsets = [0, 0], sizes = [8, 1], strides = [1, 1]} : vector<8x3xf32> to vector<8x1xf32>
    %191 = vector.extract_strided_slice %189 {offsets = [0, 1], sizes = [8, 1], strides = [1, 1]} : vector<8x3xf32> to vector<8x1xf32>
    %192 = vector.extract_strided_slice %189 {offsets = [0, 2], sizes = [8, 1], strides = [1, 1]} : vector<8x3xf32> to vector<8x1xf32>
    %193 = vector.broadcast %190 : vector<8x1xf32> to vector<8x256xf32>
    %194 = arith.mulf %187, %193 : vector<8x256xf32>
    %195 = vector.broadcast %191 : vector<8x1xf32> to vector<8x256xf32>
    %196 = arith.addf %194, %195 : vector<8x256xf32>
    %cst_74 = arith.constant 0.333333343 : f32
    %197 = vector.broadcast %cst_74 : f32 to vector<8x256xf32>
    %198 = arith.mulf %196, %197 : vector<8x256xf32>
    %199 = math.tanh %198 : vector<8x256xf32>
    %cst_75 = arith.constant 3.000000e+00 : f32
    %200 = vector.broadcast %cst_75 : f32 to vector<8x256xf32>
    %201 = arith.mulf %199, %200 : vector<8x256xf32>
    %202 = tpu.concatenate %201, %201 in 1 : vector<8x256xf32>, vector<8x256xf32> -> vector<8x512xf32>
    %203 = vector.extract_strided_slice %202 {offsets = [0, 239], sizes = [8, 256], strides = [1, 1]} : vector<8x512xf32> to vector<8x256xf32>
    %204 = vector.broadcast %3 : vector<1x256xf32> to vector<8x256xf32>
    %205 = arith.mulf %203, %204 : vector<8x256xf32>
    %206 = vector.extract_strided_slice %202 {offsets = [0, 240], sizes = [8, 256], strides = [1, 1]} : vector<8x512xf32> to vector<8x256xf32>
    %207 = vector.broadcast %5 : vector<1x256xf32> to vector<8x256xf32>
    %208 = arith.mulf %206, %207 : vector<8x256xf32>
    %209 = vector.extract_strided_slice %202 {offsets = [0, 241], sizes = [8, 256], strides = [1, 1]} : vector<8x512xf32> to vector<8x256xf32>
    %210 = vector.broadcast %7 : vector<1x256xf32> to vector<8x256xf32>
    %211 = arith.mulf %209, %210 : vector<8x256xf32>
    %212 = vector.extract_strided_slice %202 {offsets = [0, 255], sizes = [8, 256], strides = [1, 1]} : vector<8x512xf32> to vector<8x256xf32>
    %213 = vector.broadcast %9 : vector<1x256xf32> to vector<8x256xf32>
    %214 = arith.mulf %212, %213 : vector<8x256xf32>
    %215 = vector.extract_strided_slice %202 {offsets = [0, 1], sizes = [8, 256], strides = [1, 1]} : vector<8x512xf32> to vector<8x256xf32>
    %216 = vector.broadcast %11 : vector<1x256xf32> to vector<8x256xf32>
    %217 = arith.mulf %215, %216 : vector<8x256xf32>
    %218 = vector.extract_strided_slice %202 {offsets = [0, 15], sizes = [8, 256], strides = [1, 1]} : vector<8x512xf32> to vector<8x256xf32>
    %219 = vector.broadcast %13 : vector<1x256xf32> to vector<8x256xf32>
    %220 = arith.mulf %218, %219 : vector<8x256xf32>
    %221 = vector.extract_strided_slice %202 {offsets = [0, 16], sizes = [8, 256], strides = [1, 1]} : vector<8x512xf32> to vector<8x256xf32>
    %222 = vector.broadcast %15 : vector<1x256xf32> to vector<8x256xf32>
    %223 = arith.mulf %221, %222 : vector<8x256xf32>
    %224 = vector.extract_strided_slice %202 {offsets = [0, 17], sizes = [8, 256], strides = [1, 1]} : vector<8x512xf32> to vector<8x256xf32>
    %225 = vector.broadcast %17 : vector<1x256xf32> to vector<8x256xf32>
    %226 = arith.mulf %224, %225 : vector<8x256xf32>
    %227 = tpu.concatenate %205, %208, %211, %214, %201, %217, %220, %223, %226 in 0 : vector<8x256xf32>, vector<8x256xf32>, vector<8x256xf32>, vector<8x256xf32>, vector<8x256xf32>, vector<8x256xf32>, vector<8x256xf32>, vector<8x256xf32>, vector<8x256xf32> -> vector<72x256xf32>
    %c6_76 = arith.constant 6 : index
    %c0_77 = arith.constant 0 : index
    %c0_78 = arith.constant 0 : index
    %228 = vector.load %arg2[%c6_76, %c0_77, %c0_78] : memref<8x8x72xf32, #tpu.memory_space<vmem>>, vector<1x8x72xf32>
    %229 = vector.shape_cast %228 : vector<1x8x72xf32> to vector<8x72xf32>
    %cst_79 = arith.constant dense<0.000000e+00> : vector<8x256xf32>
    %230 = tpu.matmul %229, %227, %cst_79 {dimension_numbers = #tpu.dot_dimension_numbers<[1], [0], [0], [1], [0, 0, 1, 1], [], []>} : vector<8x72xf32>, vector<72x256xf32>, vector<8x256xf32> -> vector<8x256xf32>
    %231 = vector.broadcast %192 : vector<8x1xf32> to vector<8x256xf32>
    %232 = arith.addf %230, %231 : vector<8x256xf32>
    %c7_80 = arith.constant 7 : index
    %c0_81 = arith.constant 0 : index
    %c0_82 = arith.constant 0 : index
    %233 = vector.load %arg3[%c7_80, %c0_81, %c0_82] : memref<8x8x3xf32, #tpu.memory_space<vmem>>, vector<1x8x3xf32>
    %234 = vector.shape_cast %233 : vector<1x8x3xf32> to vector<8x3xf32>
    %235 = vector.extract_strided_slice %234 {offsets = [0, 0], sizes = [8, 1], strides = [1, 1]} : vector<8x3xf32> to vector<8x1xf32>
    %236 = vector.extract_strided_slice %234 {offsets = [0, 1], sizes = [8, 1], strides = [1, 1]} : vector<8x3xf32> to vector<8x1xf32>
    %237 = vector.extract_strided_slice %234 {offsets = [0, 2], sizes = [4, 1], strides = [1, 1]} : vector<8x3xf32> to vector<4x1xf32>
    %238 = vector.broadcast %235 : vector<8x1xf32> to vector<8x256xf32>
    %239 = arith.mulf %232, %238 : vector<8x256xf32>
    %240 = vector.broadcast %236 : vector<8x1xf32> to vector<8x256xf32>
    %241 = arith.addf %239, %240 : vector<8x256xf32>
    %cst_83 = arith.constant 0.333333343 : f32
    %242 = vector.broadcast %cst_83 : f32 to vector<8x256xf32>
    %243 = arith.mulf %241, %242 : vector<8x256xf32>
    %244 = math.tanh %243 : vector<8x256xf32>
    %cst_84 = arith.constant 3.000000e+00 : f32
    %245 = vector.broadcast %cst_84 : f32 to vector<8x256xf32>
    %246 = arith.mulf %244, %245 : vector<8x256xf32>
    %c7_85 = arith.constant 7 : index
    %c0_86 = arith.constant 0 : index
    %c0_87 = arith.constant 0 : index
    %247 = vector.load %arg2[%c7_85, %c0_86, %c0_87] : memref<8x8x72xf32, #tpu.memory_space<vmem>>, vector<1x8x72xf32>
    %248 = vector.shape_cast %247 : vector<1x8x72xf32> to vector<8x72xf32>
    %249 = vector.extract_strided_slice %248 {offsets = [0, 0], sizes = [4, 8], strides = [1, 1]} : vector<8x72xf32> to vector<4x8xf32>
    %cst_88 = arith.constant dense<0.000000e+00> : vector<4x256xf32>
    %250 = tpu.matmul %249, %246, %cst_88 {dimension_numbers = #tpu.dot_dimension_numbers<[1], [0], [0], [1], [0, 0, 1, 1], [], []>} : vector<4x8xf32>, vector<8x256xf32>, vector<4x256xf32> -> vector<4x256xf32>
    %251 = vector.broadcast %237 : vector<4x1xf32> to vector<4x256xf32>
    %252 = arith.addf %250, %251 : vector<4x256xf32>
    %253 = arith.addf %1, %37 : vector<4x256xf32>
    %254 = arith.addf %122, %252 : vector<4x256xf32>
    %255 = arith.addf %253, %254 : vector<4x256xf32>
    %c0_89 = arith.constant 0 : index
    %c0_90 = arith.constant 0 : index
    %c0_91 = arith.constant 0 : index
    %256 = vector.load %arg5[%c0_89, %c0_90, %c0_91] : memref<1x4x256xf32, #tpu.memory_space<vmem>>, vector<1x4x256xf32>
    %257 = vector.shape_cast %256 : vector<1x4x256xf32> to vector<4x256xf32>
    %258 = vector.shape_cast %255 : vector<4x256xf32> to vector<1x4x256xf32>
    tpu.vector_store %arg5[%c0_89, %c0_90, %c0_91], %258 {strides = array<i32>} : memref<1x4x256xf32, #tpu.memory_space<vmem>>, vector<1x4x256xf32>,
    return
  }
  func.func @transform_0(%arg0: i32) -> (i32, i32, i32) {
    %c0_i32 = arith.constant 0 : i32
    %c0_i32_0 = arith.constant 0 : i32
    %c0_i32_1 = arith.constant 0 : i32
    return %arg0, %c0_i32, %c0_i32_0 : i32, i32, i32
  }
  func.func @transform_1(%arg0: i32) -> (i32, i32, i32) {
    %c0_i32 = arith.constant 0 : i32
    %c0_i32_0 = arith.constant 0 : i32
    %c0_i32_1 = arith.constant 0 : i32
    %c0_i32_2 = arith.constant 0 : i32
    return %c0_i32, %c0_i32_0, %c0_i32_1 : i32, i32, i32
  }
  func.func @transform_2(%arg0: i32) -> (i32, i32, i32) {
    %c0_i32 = arith.constant 0 : i32
    %c0_i32_0 = arith.constant 0 : i32
    %c0_i32_1 = arith.constant 0 : i32
    %c0_i32_2 = arith.constant 0 : i32
    return %c0_i32, %c0_i32_0, %c0_i32_1 : i32, i32, i32
  }
  func.func @transform_3(%arg0: i32) -> (i32, i32, i32) {
    %c0_i32 = arith.constant 0 : i32
    %c0_i32_0 = arith.constant 0 : i32
    %c0_i32_1 = arith.constant 0 : i32
    %c0_i32_2 = arith.constant 0 : i32
    return %c0_i32, %c0_i32_0, %c0_i32_1 : i32, i32, i32
  }
  func.func @transform_4(%arg0: i32) -> (i32, i32, i32) {
    %c0_i32 = arith.constant 0 : i32
    %c0_i32_0 = arith.constant 0 : i32
    %c0_i32_1 = arith.constant 0 : i32
    return %arg0, %c0_i32, %c0_i32_0 : i32, i32, i32
  }
}

</mosaic_0001>

<llo_original>
// kernel: tpu_custom_call.1
$region0: #{tpu_custom_call.1}
  #allocation0 [shape = 'u32[]', space=smem, size = 0x4, offset = 0x4, fixed_abs, tag = 'smem constant byte address 0x4 - core index']
  #allocation1 [shape = 'u32[144,128]{1,0:T(1,128)}', space=vmem, size = 0x12000, scoped, tag = 'internal scratch']
  %s0 = inlined_call_operand.hbm [shape: f32[2,4,256], index: 0, kind: input, shape index: {}]
  %s1 = inlined_call_operand.vmem [shape: f32[8,8,72], index: 1, kind: input, shape index: {}]
  %s2 = inlined_call_operand.vmem [shape: f32[8,8,3], index: 2, kind: input, shape index: {}]
  %s3 = inlined_call_operand.vmem [shape: f32[9,1,256], index: 3, kind: input, shape index: {}]
  %s4 = inlined_call_operand.hbm [shape: f32[2,4,256], index: 4, kind: output, shape index: {}]
  %s5 = sld [smem:[#allocation0]]
  $region53: #{tpu_custom_call.1} parent=0
    _
  %s7 = ssub.s32 1, %s5
  %s8 = scalar_select 0, %s7, %s5
  $region1: #{tpu_custom_call.1} parent=0
    #allocation2 [shape = 'u8[8192]{0}', space=vmem, size = 0x2000, scoped, tag = 'input window, operand 0']
    #allocation3 [shape = 's32[2]{0}', space=sflag, size = 0x8, scoped, tag = 'scoped memory for tpu_custom_call.1']
    #allocation4 [shape = 's32[2]{0}', space=sflag, size = 0x8, scoped, tag = 'scoped memory for tpu_custom_call.1']
    #allocation5 [shape = 'u8[8192]{0}', space=vmem, size = 0x2000, scoped, tag = 'output window, operand 0']
    %9 = vsyncpa [#allocation3], 0
    %s10 = scalar_lea.sflag [#allocation3], 1
    %11 = vsyncpa %s10, 0
    %12 = vsyncpa [#allocation4], 0
    %s13 = scalar_lea.sflag [#allocation4], 1
    %14 = vsyncpa %s13, 0
    loop: start=0, step=1, limit=4
    $region2: #{tpu_custom_call.1} parent=1 // loop_pre_header
      _
    $region3: #{tpu_custom_call.1} parent=1 // loop_header
      %s16 = sphi 0, %s20
      %p17 = scmp.ge.s32.totalorder %s16, 4
      %s26 = sphi 0, %s28
      %s29 = sphi 0, %s26
      %s30 = sphi 0, %s29
      %s46 = sphi 0, %s30
      %s50 = sphi 0, %s50
      %s52 = sphi 0, %s50
      %s53 = sphi 0, %s52
      %s67 = sphi 0, %s53
      %s71 = sphi 0, %s71
      %s73 = sphi 0, %s71
      %s74 = sphi 0, %s73
      %s88 = sphi 0, %s74
      %s92 = sphi 0, %s92
      %s94 = sphi 0, %s92
      %s95 = sphi 0, %s94
      %s109 = sphi 0, %s95
      %s115 = sphi 0, %s117
      %s118 = sphi 0, %s115
      %s119 = sphi 0, %s118
      %s135 = sphi 0, %s119
    $region4: #{tpu_custom_call.1} parent=1 // loop_header_branch
      %19 = sbr.rel (%p17) target = $region8
    $region5: #{tpu_custom_call.1} parent=1 // loop_body
      %s21 = ssub.s32 %s16, 1
      %s22 = ssub.s32 %s16, 2
      %s23 = sadd.s32 %s16, 1
      %s24 = ssub.s32 %s16, %s23
      %p25 = scmp.eq.s32.totalorder %s24, 0
      %s27 = sadd.s32 %s26, 1
      %s28 = scalar_select %p25, %s26, %s27
      %p31 = pneg %p25
      %p32 = scmp.eq.s32.totalorder %s16, 1
      %p33 = por %p31, %p32
      %p34 = scmp.ne.s32.totalorder %s26, %s29
      %p35 = scmp.eq.s32.totalorder %s16, 0
      %p36 = por %p34, %p35
      %p37 = scmp.ne.s32.totalorder %s26, %s29
      %p38 = scmp.eq.s32.totalorder %s21, 1
      %p39 = por %p37, %p38
      %p40 = scmp.ne.s32.totalorder %s29, %s30
      %p41 = scmp.eq.s32.totalorder %s21, 0
      %p42 = por %p40, %p41
      %p43 = scmp.ne.s32.totalorder %s29, %s30
      %p44 = scmp.eq.s32.totalorder %s22, 1
      %p45 = por %p43, %p44
      %p47 = scmp.ne.s32.totalorder %s30, %s46
      %p48 = scmp.eq.s32.totalorder %s22, 0
      %p49 = por %p47, %p48
      %s51 = sadd.s32 %s50, 1
      %p54 = scmp.eq.s32.totalorder %s16, 1
      %p55 = scmp.ne.s32.totalorder %s50, %s52
      %p56 = scmp.eq.s32.totalorder %s16, 0
      %p57 = por %p55, %p56
      %p58 = scmp.ne.s32.totalorder %s50, %s52
      %p59 = scmp.eq.s32.totalorder %s21, 1
      %p60 = por %p58, %p59
      %p61 = scmp.ne.s32.totalorder %s52, %s53
      %p62 = scmp.eq.s32.totalorder %s21, 0
      %p63 = por %p61, %p62
      %p64 = scmp.ne.s32.totalorder %s52, %s53
      %p65 = scmp.eq.s32.totalorder %s22, 1
      %p66 = por %p64, %p65
      %p68 = scmp.ne.s32.totalorder %s53, %s67
      %p69 = scmp.eq.s32.totalorder %s22, 0
      %p70 = por %p68, %p69
      %s72 = sadd.s32 %s71, 1
      %p75 = scmp.eq.s32.totalorder %s16, 1
      %p76 = scmp.ne.s32.totalorder %s71, %s73
      %p77 = scmp.eq.s32.totalorder %s16, 0
      %p78 = por %p76, %p77
      %p79 = scmp.ne.s32.totalorder %s71, %s73
      %p80 = scmp.eq.s32.totalorder %s21, 1
      %p81 = por %p79, %p80
      %p82 = scmp.ne.s32.totalorder %s73, %s74
      %p83 = scmp.eq.s32.totalorder %s21, 0
      %p84 = por %p82, %p83
      %p85 = scmp.ne.s32.totalorder %s73, %s74
      %p86 = scmp.eq.s32.totalorder %s22, 1
      %p87 = por %p85, %p86
      %p89 = scmp.ne.s32.totalorder %s74, %s88
      %p90 = scmp.eq.s32.totalorder %s22, 0
      %p91 = por %p89, %p90
      %s93 = sadd.s32 %s92, 1
      %p96 = scmp.eq.s32.totalorder %s16, 1
      %p97 = scmp.ne.s32.totalorder %s92, %s94
      %p98 = scmp.eq.s32.totalorder %s16, 0
      %p99 = por %p97, %p98
      %p100 = scmp.ne.s32.totalorder %s92, %s94
      %p101 = scmp.eq.s32.totalorder %s21, 1
      %p102 = por %p100, %p101
      %p103 = scmp.ne.s32.totalorder %s94, %s95
      %p104 = scmp.eq.s32.totalorder %s21, 0
      %p105 = por %p103, %p104
      %p106 = scmp.ne.s32.totalorder %s94, %s95
      %p107 = scmp.eq.s32.totalorder %s22, 1
      %p108 = por %p106, %p107
      %p110 = scmp.ne.s32.totalorder %s95, %s109
      %p111 = scmp.eq.s32.totalorder %s22, 0
      %p112 = por %p110, %p111
      %s113 = ssub.s32 %s16, %s23
      %p114 = scmp.eq.s32.totalorder %s113, 0
      %s116 = sadd.s32 %s115, 1
      %s117 = scalar_select %p114, %s115, %s116
      %p120 = pneg %p114
      %p121 = scmp.eq.s32.totalorder %s16, 1
      %p122 = por %p120, %p121
      %p123 = scmp.ne.s32.totalorder %s115, %s118
      %p124 = scmp.eq.s32.totalorder %s16, 0
      %p125 = por %p123, %p124
      %p126 = scmp.ne.s32.totalorder %s115, %s118
      %p127 = scmp.eq.s32.totalorder %s21, 1
      %p128 = por %p126, %p127
      %p129 = scmp.ne.s32.totalorder %s118, %s119
      %p130 = scmp.eq.s32.totalorder %s21, 0
      %p131 = por %p129, %p130
      %p132 = scmp.ne.s32.totalorder %s118, %s119
      %p133 = scmp.eq.s32.totalorder %s22, 1
      %p134 = por %p132, %p133
      %p136 = scmp.ne.s32.totalorder %s119, %s135
      %p137 = scmp.eq.s32.totalorder %s22, 0
      %p138 = por %p136, %p137
      %p139 = scmp.le.s32.totalorder 1, %s16
      %p140 = scmp.lt.s32.totalorder %s16, 3
      %p141 = pnand %p139, %p140
      %p142 = pneg %p141
      // Predicated region
      $region9: #{tpu_custom_call.1} parent=5 // pred_check
        _
      $region10: #{tpu_custom_call.1} parent=5 // pred_check_branch
        %144 = sbr.rel (%p141) target = $region12
      $region11: #{tpu_custom_call.1} parent=5 // pred_region
        %s145 = ssub.s32 %s16, 1
        // Predicated region
        $region13: #{tpu_custom_call.1} parent=11 // pred_check
          %p146 = pneg %p63
        $region14: #{tpu_custom_call.1} parent=11 // pred_check_branch
          %148 = sbr.rel (%p146) target = $region16
        $region15: #{tpu_custom_call.1} parent=11 // pred_region
          _
        $region16: #{tpu_custom_call.1} parent=11 // pred_fallthru
          _
        // Predicated region
        $region17: #{tpu_custom_call.1} parent=11 // pred_check
          %p149 = pneg %p84
        $region18: #{tpu_custom_call.1} parent=11 // pred_check_branch
          %151 = sbr.rel (%p149) target = $region20
        $region19: #{tpu_custom_call.1} parent=11 // pred_region
          _
        $region20: #{tpu_custom_call.1} parent=11 // pred_fallthru
          _
        // Predicated region
        $region21: #{tpu_custom_call.1} parent=11 // pred_check
          %p152 = pneg %p105
        $region22: #{tpu_custom_call.1} parent=11 // pred_check_branch
          %154 = sbr.rel (%p152) target = $region24
        $region23: #{tpu_custom_call.1} parent=11 // pred_region
          _
        $region24: #{tpu_custom_call.1} parent=11 // pred_fallthru
          _
      $region12: #{tpu_custom_call.1} parent=5 // pred_fallthru
        _
      %p155 = scmp.lt.s32.totalorder %s16, 2
      // Predicated region
      $region25: #{tpu_custom_call.1} parent=5 // pred_check
        %p156 = pneg %p155
      $region26: #{tpu_custom_call.1} parent=5 // pred_check_branch
        %158 = sbr.rel (%p156) target = $region28
      $region27: #{tpu_custom_call.1} parent=5 // pred_region
        // Predicated region
        $region29: #{tpu_custom_call.1} parent=27 // pred_check
          %p159 = pneg %p36
        $region30: #{tpu_custom_call.1} parent=27 // pred_check_branch
          %161 = sbr.rel (%p159) target = $region32
        $region31: #{tpu_custom_call.1} parent=27 // pred_region
          %s162 = sand.u32 %s26, 1
          %s163 = scalar_lea.sflag [#allocation3], %s162
          %s164 = sand.u32 %s26, 1
          %s165 = smul.addr %s164, 8
          %s166 = scalar_lea.vmem [#allocation2], %s165
          %s168 = ssub.s32 128, 128
          %169 = vsyncadd %s163, %s168
          %s170 = smul.addr %s16, 2
          %s171 = smul.addr %s170, 64
          %s172 = scalar_lea.hbm %s0, %s171
          %s174 = sshll.u32 %s166, 4
          %s175 = int_to_ptr.vmem [resolvable:$true] %s174
          %177 = dma.hbm_to_vmem [thread:$0]  %s172, 128, %s175, %s163
        $region32: #{tpu_custom_call.1} parent=27 // pred_fallthru
          _
      $region28: #{tpu_custom_call.1} parent=5 // pred_fallthru
        _
      %p178 = scmp.le.s32.totalorder 1, %s16
      %p179 = scmp.lt.s32.totalorder %s16, 3
      %p180 = pnand %p178, %p179
      %p181 = pneg %p180
      // Predicated region
      $region33: #{tpu_custom_call.1} parent=5 // pred_check
        _
      $region34: #{tpu_custom_call.1} parent=5 // pred_check_branch
        %183 = sbr.rel (%p180) target = $region36
      $region35: #{tpu_custom_call.1} parent=5 // pred_region
        %s184 = ssub.s32 %s16, 1
        %s185 = sand.u32 %s29, 1
        %s186 = scalar_lea.sflag [#allocation3], %s185
        %s187 = sand.u32 %s29, 1
        %s188 = smul.addr %s187, 8
        %s189 = scalar_lea.vmem [#allocation2], %s188
        // Predicated region
        $region37: #{tpu_custom_call.1} parent=35 // pred_check
          %p190 = pneg %p42
        $region38: #{tpu_custom_call.1} parent=35 // pred_check_branch
          %192 = sbr.rel (%p190) target = $region40
        $region39: #{tpu_custom_call.1} parent=35 // pred_region
          %193 = dma.done %s186, 128
        $region40: #{tpu_custom_call.1} parent=35 // pred_fallthru
          _
        %s194 = sand.u32 %s29, 1
        %s195 = scalar_lea.sflag [#allocation3], %s194
        %s196 = sand.u32 %s29, 1
        %s197 = smul.addr %s196, 8
        %s198 = scalar_lea.vmem [#allocation2], %s197
        %p199 = pneg %p42
        %p200 = pneg %p39
        %p201 = pneg %p63
        %p202 = pneg %p60
        %p203 = pneg %p84
        %p204 = pneg %p81
        %p205 = pneg %p105
        %p206 = pneg %p102
        %p207 = pneg %p131
        %p208 = pneg %p128
        %s209 = sand.u32 %s118, 1
        %s210 = scalar_lea.sflag [#allocation4], %s209
        %s211 = sand.u32 %s118, 1
        %s212 = smul.addr %s211, 8
        %s213 = scalar_lea.vmem [#allocation5], %s212
        %v214 = vld [vmem:[%s189] sm:$0xff]
        %v215 = vld [vmem:[%s3] sm:$0x3]
        %s216 = scalar_lea.vmem %s3, 2
        %v217 = vld [vmem:[%s216] sm:$0x3]
        %s218 = scalar_lea.vmem %s3, 4
        %v219 = vld [vmem:[%s218] sm:$0x3]
        %s220 = scalar_lea.vmem %s3, 6
        %v221 = vld [vmem:[%s220] sm:$0x3]
        %s222 = scalar_lea.vmem %s3, 10
        %v223 = vld [vmem:[%s222] sm:$0x3]
        %s224 = scalar_lea.vmem %s3, 12
        %v225 = vld [vmem:[%s224] sm:$0x3]
        %s226 = scalar_lea.vmem %s3, 14
        %v227 = vld [vmem:[%s226] sm:$0x3]
        %s228 = scalar_lea.vmem %s3, 16
        %v229 = vld [vmem:[%s228] sm:$0x3]
        %v230 = vld [vmem:[%s2] sm:$0xff]
        %232 = vset.pattern.permute.xlu0 0
        %233 = vperm.xlu0 %232, %v230
        %v234 = vpop.permute.xlu0 %233
        %v236 = vunpack.c.l.s4 839922192
        %v237 = vunpack.c.0.s8 %v236
        %v238 = vlaneseq
        %v239 = vshrl.u32 %v238, 7
        %v240 = vsub.s32 %v237, %v239
        %v241 = vrot.slane %v234, %v240
        %v243 = vmul.f32 %v214, %v241
        %244 = vset.pattern.permute.xlu0 1
        %245 = vperm.xlu0 %244, %v230
        %v246 = vpop.permute.xlu0 %245
        %v248 = vunpack.c.l.s4 839922192
        %v249 = vunpack.c.0.s8 %v248
        %v250 = vlaneseq
        %v251 = vshrl.u32 %v250, 7
        %v252 = vsub.s32 %v249, %v251
        %v253 = vrot.slane %v246, %v252
        %v255 = vadd.f32 %v243, %v253
        %v256 = vmul.f32 %v255, 0.33333334
        %v257 = vtanh.pop %v256
        %v258 = vmul.f32 %v257, 3.0
        %v259 = vld [vmem:[%s1] sm:$0xff]
        %260 = vset.pattern.permute.xlu0 2
        %261 = vperm.xlu0 %260, %v230
        %v262 = vpop.permute.xlu0 %261
        %v265 = vcombine.high %v258, %v258
        %vm266 = vcmask 31744
        %v268 = vsel %vm266, %v259, 0
        %vm270 = vcmask 1043456
        %v271 = vsel %vm270, %v258, 0
        %v273 = vsel %vm270, %v265, 0
        %275 = vmatprep.subr.mxu0 %v273
        %276 = vmatpush1.msra.mxu0 %v271
        %277 = vmatprep.subr.mxu0 0.0
        %278 = vmatpush1.msra.mxu0 0.0
        %279 = vmatprep.subr.mxu0 0.0
        %280 = vmatpush1.msra.mxu0 0.0
        %281 = vmatprep.subr.mxu0 0.0
        %282 = vmatpush1.msra.mxu0 0.0
        %283 = vmatprep.subr.mxu0 0.0
        %284 = vmatpush1.msra.mxu0 0.0
        %285 = vmatprep.subr.mxu0 0.0
        %286 = vmatpush1.msra.mxu0 0.0
        %287 = vmatprep.subr.mxu0 0.0
        %288 = vmatpush1.msra.mxu0 0.0
        %289 = vmatprep.subr.mxu0 0.0
        %290 = vmatpush1.msra.mxu0 0.0
        %291 = vmatprep.subr.mxu0 0.0
        %292 = vmatpush1.msra.mxu0 0.0
        %293 = vmatprep.subr.mxu0 0.0
        %294 = vmatpush1.msra.mxu0 0.0
        %295 = vmatprep.subr.mxu0 0.0
        %296 = vmatpush1.msra.mxu0 0.0
        %297 = vmatprep.subr.mxu0 0.0
        %298 = vmatpush1.msra.mxu0 0.0
        %299 = vmatprep.subr.mxu0 0.0
        %300 = vmatpush1.msra.mxu0 0.0
        %301 = vmatprep.subr.mxu0 0.0
        %302 = vmatpush1.msra.mxu0 0.0
        %303 = vmatprep.subr.mxu0 0.0
        %304 = vmatpush1.msra.mxu0 0.0
        %305 = vmatprep.subr.mxu0 0.0
        %306 = vmatpush1.msra.mxu0 0.0
        %307 = vmatprep.subr.mxu0 0.0
        %308 = vmatpush1.msra.mxu0 0.0
        %309 = vmatprep.subr.mxu0 0.0
        %310 = vmatpush1.msra.mxu0 0.0
        %311 = vmatprep.subr.mxu0 0.0
        %312 = vmatpush1.msra.mxu0 0.0
        %313 = vmatprep.subr.mxu0 0.0
        %314 = vmatpush1.msra.mxu0 0.0
        %315 = vmatprep.subr.mxu0 0.0
        %316 = vmatpush1.msra.mxu0 0.0
        %317 = vmatprep.subr.mxu0 0.0
        %318 = vmatpush1.msra.mxu0 0.0
        %319 = vmatprep.subr.mxu0 0.0
        %320 = vmatpush1.msra.mxu0 0.0
        %321 = vmatprep.subr.mxu0 0.0
        %322 = vmatpush1.msra.mxu0 0.0
        %323 = vmatprep.subr.mxu0 0.0
        %324 = vmatpush1.msra.mxu0 0.0
        %325 = vmatprep.subr.mxu0 0.0
        %326 = vmatpush1.msra.mxu0 0.0
        %327 = vmatprep.subr.mxu0 0.0
        %328 = vmatpush1.msra.mxu0 0.0
        %329 = vmatprep.subr.mxu0 0.0
        %330 = vmatpush1.msra.mxu0 0.0
        %331 = vmatprep.subr.mxu0 0.0
        %332 = vmatpush1.msra.mxu0 0.0
        %333 = vmatprep.subr.mxu0 0.0
        %334 = vmatpush1.msra.mxu0 0.0
        %335 = vmatprep.subr.mxu0 0.0
        %336 = vmatpush1.msra.mxu0 0.0
        %337 = vmatprep.subr.mxu0 0.0
        %338 = vmatpush1.msra.mxu0 0.0
        %339 = vmatprep.mubr.f32.mxu0 0.0
        %340 = vmatmul.mubr.f32.gmra.mrb[0].mxu0 %v268
        %v341 = vpop.f32.mrb[0].mxu0
        %v342 = vadd.f32 %v262, %v341
        %v343 = vpop.f32.mrb[0].mxu0
        %v344 = vadd.f32 %v262, %v343
        %345 = vdwg.mxu0
        %s346 = scalar_lea.vmem %s2, 8
        %v347 = vld [vmem:[%s346] sm:$0xff]
        %349 = vset.pattern.permute.xlu0 0
        %350 = vperm.xlu0 %349, %v347
        %v351 = vpop.permute.xlu0 %350
        %v353 = vunpack.c.l.s4 839922192
        %v354 = vunpack.c.0.s8 %v353
        %v355 = vlaneseq
        %v356 = vshrl.u32 %v355, 7
        %v357 = vsub.s32 %v354, %v356
        %v358 = vrot.slane %v351, %v357
        %v360 = vmul.f32 %v214, %v358
        %361 = vset.pattern.permute.xlu0 1
        %362 = vperm.xlu0 %361, %v347
        %v363 = vpop.permute.xlu0 %362
        %v365 = vunpack.c.l.s4 839922192
        %v366 = vunpack.c.0.s8 %v365
        %v367 = vlaneseq
        %v368 = vshrl.u32 %v367, 7
        %v369 = vsub.s32 %v366, %v368
        %v370 = vrot.slane %v363, %v369
        %v372 = vadd.f32 %v360, %v370
        %v373 = vmul.f32 %v372, 0.33333334
        %v374 = vtanh.pop %v373
        %v375 = vmul.f32 %v374, 3.0
        %s376 = scalar_lea.vmem %s1, 8
        %v377 = vld [vmem:[%s376] sm:$0xff]
        %378 = vset.pattern.permute.xlu0 2
        %379 = vperm.xlu0 %378, %v347
        %v380 = vpop.permute.xlu0 %379
        %v383 = vcombine.high %v375, %v375
        %v385 = vsel %vm266, %v377, 0
        %v387 = vsel %vm270, %v375, 0
        %v389 = vsel %vm270, %v383, 0
        %391 = vmatprep.subr.mxu0 %v389
        %392 = vmatpush1.msra.mxu0 %v387
        %393 = vmatprep.subr.mxu0 0.0
        %394 = vmatpush1.msra.mxu0 0.0
        %395 = vmatprep.subr.mxu0 0.0
        %396 = vmatpush1.msra.mxu0 0.0
        %397 = vmatprep.subr.mxu0 0.0
        %398 = vmatpush1.msra.mxu0 0.0
        %399 = vmatprep.subr.mxu0 0.0
        %400 = vmatpush1.msra.mxu0 0.0
        %401 = vmatprep.subr.mxu0 0.0
        %402 = vmatpush1.msra.mxu0 0.0
        %403 = vmatprep.subr.mxu0 0.0
        %404 = vmatpush1.msra.mxu0 0.0
        %405 = vmatprep.subr.mxu0 0.0
        %406 = vmatpush1.msra.mxu0 0.0
        %407 = vmatprep.subr.mxu0 0.0
        %408 = vmatpush1.msra.mxu0 0.0
        %409 = vmatprep.subr.mxu0 0.0
        %410 = vmatpush1.msra.mxu0 0.0
        %411 = vmatprep.subr.mxu0 0.0
        %412 = vmatpush1.msra.mxu0 0.0
        %413 = vmatprep.subr.mxu0 0.0
        %414 = vmatpush1.msra.mxu0 0.0
        %415 = vmatprep.subr.mxu0 0.0
        %416 = vmatpush1.msra.mxu0 0.0
        %417 = vmatprep.subr.mxu0 0.0
        %418 = vmatpush1.msra.mxu0 0.0
        %419 = vmatprep.subr.mxu0 0.0
        %420 = vmatpush1.msra.mxu0 0.0
        %421 = vmatprep.subr.mxu0 0.0
        %422 = vmatpush1.msra.mxu0 0.0
        %423 = vmatprep.subr.mxu0 0.0
        %424 = vmatpush1.msra.mxu0 0.0
        %425 = vmatprep.subr.mxu0 0.0
        %426 = vmatpush1.msra.mxu0 0.0
        %427 = vmatprep.subr.mxu0 0.0
        %428 = vmatpush1.msra.mxu0 0.0
        %429 = vmatprep.subr.mxu0 0.0
        %430 = vmatpush1.msra.mxu0 0.0
        %431 = vmatprep.subr.mxu0 0.0
        %432 = vmatpush1.msra.mxu0 0.0
        %433 = vmatprep.subr.mxu0 0.0
        %434 = vmatpush1.msra.mxu0 0.0
        %435 = vmatprep.subr.mxu0 0.0
        %436 = vmatpush1.msra.mxu0 0.0
        %437 = vmatprep.subr.mxu0 0.0
        %438 = vmatpush1.msra.mxu0 0.0
        %439 = vmatprep.subr.mxu0 0.0
        %440 = vmatpush1.msra.mxu0 0.0
        %441 = vmatprep.subr.mxu0 0.0
        %442 = vmatpush1.msra.mxu0 0.0
        %443 = vmatprep.subr.mxu0 0.0
        %444 = vmatpush1.msra.mxu0 0.0
        %445 = vmatprep.subr.mxu0 0.0
        %446 = vmatpush1.msra.mxu0 0.0
        %447 = vmatprep.subr.mxu0 0.0
        %448 = vmatpush1.msra.mxu0 0.0
        %449 = vmatprep.subr.mxu0 0.0
        %450 = vmatpush1.msra.mxu0 0.0
        %451 = vmatprep.subr.mxu0 0.0
        %452 = vmatpush1.msra.mxu0 0.0
        %453 = vmatprep.subr.mxu0 0.0
        %454 = vmatpush1.msra.mxu0 0.0
        %455 = vmatprep.mubr.f32.mxu0 0.0
        %456 = vmatmul.mubr.f32.gmra.mrb[0].mxu0 %v385
        %v457 = vpop.f32.mrb[0].mxu0
        %v458 = vadd.f32 %v380, %v457
        %v459 = vpop.f32.mrb[0].mxu0
        %v460 = vadd.f32 %v380, %v459
        %461 = vdwg.mxu0
        %s462 = scalar_lea.vmem %s2, 16
        %v463 = vld [vmem:[%s462] sm:$0xff]
        %465 = vset.pattern.permute.xlu0 0
        %466 = vperm.xlu0 %465, %v463
        %v467 = vpop.permute.xlu0 %466
        %v469 = vmul.f32 %v458, %v467
        %v470 = vmul.f32 %v460, %v467
        %471 = vset.pattern.permute.xlu0 1
        %472 = vperm.xlu0 %471, %v463
        %v473 = vpop.permute.xlu0 %472
        %v475 = vadd.f32 %v469, %v473
        %v476 = vadd.f32 %v470, %v473
        %v477 = vmul.f32 %v475, 0.33333334
        %v478 = vmul.f32 %v476, 0.33333334
        %v479 = vtanh.pop %v477
        %v480 = vtanh.pop %v478
        %v481 = vmul.f32 %v479, 3.0
        %v482 = vmul.f32 %v480, 3.0
        %v484 = vlaneseq
        %v485 = vshrl.u32 %v484, 7
        %v486 = vsub.s32 0, %v485
        %v487 = vrot.slane %v215, %v486
        %v488 = vlaneseq
        %v489 = vshrl.u32 %v488, 7
        %v490 = vsub.s32 1, %v489
        %v491 = vrot.slane %v215, %v490
        %492 = vrot.lane.b32.xlu0 %v487, 111
        %v493 = vpop.permute.xlu0 %492
        %494 = vrot.lane.b32.xlu0 %v491, 111
        %v495 = vpop.permute.xlu0 %494
        %vm496 = vcmask 908288
        %v497 = vsel %vm496, %v493, %v495
        %v501 = vmul.f32 %v482, %v493
        %v502 = vmul.f32 %v481, %v497
        %v503 = vmul.f32 %v482, %v495
        %v505 = vlaneseq
        %v506 = vshrl.u32 %v505, 7
        %v507 = vsub.s32 0, %v506
        %v508 = vrot.slane %v217, %v507
        %v509 = vlaneseq
        %v510 = vshrl.u32 %v509, 7
        %v511 = vsub.s32 1, %v510
        %v512 = vrot.slane %v217, %v511
        %513 = vrot.lane.b32.xlu0 %v508, 112
        %v514 = vpop.permute.xlu0 %513
        %515 = vrot.lane.b32.xlu0 %v512, 112
        %v516 = vpop.permute.xlu0 %515
        %vm517 = vcmask 916480
        %v518 = vsel %vm517, %v514, %v516
        %v522 = vmul.f32 %v482, %v514
        %v523 = vmul.f32 %v481, %v518
        %v524 = vmul.f32 %v482, %v516
        %v526 = vlaneseq
        %v527 = vshrl.u32 %v526, 7
        %v528 = vsub.s32 0, %v527
        %v529 = vrot.slane %v219, %v528
        %v530 = vlaneseq
        %v531 = vshrl.u32 %v530, 7
        %v532 = vsub.s32 1, %v531
        %v533 = vrot.slane %v219, %v532
        %534 = vrot.lane.b32.xlu0 %v529, 113
        %v535 = vpop.permute.xlu0 %534
        %536 = vrot.lane.b32.xlu0 %v533, 113
        %v537 = vpop.permute.xlu0 %536
        %vm538 = vcmask 924672
        %v539 = vsel %vm538, %v535, %v537
        %v543 = vmul.f32 %v482, %v535
        %v544 = vmul.f32 %v481, %v539
        %v545 = vmul.f32 %v482, %v537
        %v547 = vlaneseq
        %v548 = vshrl.u32 %v547, 7
        %v549 = vsub.s32 0, %v548
        %v550 = vrot.slane %v221, %v549
        %v551 = vlaneseq
        %v552 = vshrl.u32 %v551, 7
        %v553 = vsub.s32 1, %v552
        %v554 = vrot.slane %v221, %v553
        %555 = vrot.lane.b32.xlu0 %v550, 127
        %v556 = vpop.permute.xlu0 %555
        %557 = vrot.lane.b32.xlu0 %v554, 127
        %v558 = vpop.permute.xlu0 %557
        %vm559 = vcmask 1039360
        %v560 = vsel %vm559, %v556, %v558
        %v564 = vmul.f32 %v482, %v556
        %v565 = vmul.f32 %v481, %v560
        %v566 = vmul.f32 %v482, %v558
        %v568 = vlaneseq
        %v569 = vshrl.u32 %v568, 7
        %v570 = vsub.s32 0, %v569
        %v571 = vrot.slane %v223, %v570
        %v572 = vlaneseq
        %v573 = vshrl.u32 %v572, 7
        %v574 = vsub.s32 1, %v573
        %v575 = vrot.slane %v223, %v574
        %576 = vrot.lane.b32.xlu0 %v571, 1
        %v577 = vpop.permute.xlu0 %576
        %578 = vrot.lane.b32.xlu0 %v575, 1
        %v579 = vpop.permute.xlu0 %578
        %vm580 = vcmask 7168
        %v581 = vsel %vm580, %v577, %v579
        %v585 = vmul.f32 %v481, %v577
        %v586 = vmul.f32 %v482, %v581
        %v587 = vmul.f32 %v481, %v579
        %v589 = vlaneseq
        %v590 = vshrl.u32 %v589, 7
        %v591 = vsub.s32 0, %v590
        %v592 = vrot.slane %v225, %v591
        %v593 = vlaneseq
        %v594 = vshrl.u32 %v593, 7
        %v595 = vsub.s32 1, %v594
        %v596 = vrot.slane %v225, %v595
        %597 = vrot.lane.b32.xlu0 %v592, 15
        %v598 = vpop.permute.xlu0 %597
        %599 = vrot.lane.b32.xlu0 %v596, 15
        %v600 = vpop.permute.xlu0 %599
        %vm601 = vcmask 121856
        %v602 = vsel %vm601, %v598, %v600
        %v606 = vmul.f32 %v481, %v598
        %v607 = vmul.f32 %v482, %v602
        %v608 = vmul.f32 %v481, %v600
        %v610 = vlaneseq
        %v611 = vshrl.u32 %v610, 7
        %v612 = vsub.s32 0, %v611
        %v613 = vrot.slane %v227, %v612
        %v614 = vlaneseq
        %v615 = vshrl.u32 %v614, 7
        %v616 = vsub.s32 1, %v615
        %v617 = vrot.slane %v227, %v616
        %618 = vrot.lane.b32.xlu0 %v613, 16
        %v619 = vpop.permute.xlu0 %618
        %620 = vrot.lane.b32.xlu0 %v617, 16
        %v621 = vpop.permute.xlu0 %620
        %vm622 = vcmask 130048
        %v623 = vsel %vm622, %v619, %v621
        %v627 = vmul.f32 %v481, %v619
        %v628 = vmul.f32 %v482, %v623
        %v629 = vmul.f32 %v481, %v621
        %v631 = vlaneseq
        %v632 = vshrl.u32 %v631, 7
        %v633 = vsub.s32 0, %v632
        %v634 = vrot.slane %v229, %v633
        %v635 = vlaneseq
        %v636 = vshrl.u32 %v635, 7
        %v637 = vsub.s32 1, %v636
        %v638 = vrot.slane %v229, %v637
        %639 = vrot.lane.b32.xlu0 %v634, 17
        %v640 = vpop.permute.xlu0 %639
        %641 = vrot.lane.b32.xlu0 %v638, 17
        %v642 = vpop.permute.xlu0 %641
        %vm643 = vcmask 138240
        %v644 = vsel %vm643, %v640, %v642
        %v648 = vmul.f32 %v481, %v640
        %v649 = vmul.f32 %v482, %v644
        %v650 = vmul.f32 %v481, %v642
        %654 = vrot.lane.b32.xlu0 %v522, 127
        %v655 = vpop.permute.xlu0 %654
        %656 = vrot.lane.b32.xlu0 %v523, 127
        %v657 = vpop.permute.xlu0 %656
        %658 = vrot.lane.b32.xlu0 %v524, 127
        %v659 = vpop.permute.xlu0 %658
        %v660 = vsel %vm559, %v655, %v657
        %v661 = vsel %vm559, %v657, %v659
        %665 = vrot.lane.b32.xlu0 %v543, 126
        %v666 = vpop.permute.xlu0 %665
        %667 = vrot.lane.b32.xlu0 %v544, 126
        %v668 = vpop.permute.xlu0 %667
        %669 = vrot.lane.b32.xlu0 %v545, 126
        %v670 = vpop.permute.xlu0 %669
        %vm671 = vcmask 1031168
        %v672 = vsel %vm671, %v666, %v668
        %v673 = vsel %vm671, %v668, %v670
        %677 = vrot.lane.b32.xlu0 %v564, 112
        %v678 = vpop.permute.xlu0 %677
        %679 = vrot.lane.b32.xlu0 %v565, 112
        %v680 = vpop.permute.xlu0 %679
        %681 = vrot.lane.b32.xlu0 %v566, 112
        %v682 = vpop.permute.xlu0 %681
        %v683 = vsel %vm517, %v678, %v680
        %v684 = vsel %vm517, %v680, %v682
        %687 = vrot.lane.b32.xlu0 %v481, 111
        %v688 = vpop.permute.xlu0 %687
        %689 = vrot.lane.b32.xlu0 %v482, 111
        %v690 = vpop.permute.xlu0 %689
        %v691 = vsel %vm496, %v688, %v690
        %695 = vrot.lane.b32.xlu0 %v585, 110
        %v696 = vpop.permute.xlu0 %695
        %697 = vrot.lane.b32.xlu0 %v586, 110
        %v698 = vpop.permute.xlu0 %697
        %699 = vrot.lane.b32.xlu0 %v587, 110
        %v700 = vpop.permute.xlu0 %699
        %vm701 = vcmask 900096
        %v702 = vsel %vm701, %v696, %v698
        %v703 = vsel %vm701, %v698, %v700
        %707 = vrot.lane.b32.xlu0 %v606, 96
        %v708 = vpop.permute.xlu0 %707
        %709 = vrot.lane.b32.xlu0 %v607, 96
        %v710 = vpop.permute.xlu0 %709
        %711 = vrot.lane.b32.xlu0 %v608, 96
        %v712 = vpop.permute.xlu0 %711
        %vm713 = vcmask 785408
        %v714 = vsel %vm713, %v708, %v710
        %v715 = vsel %vm713, %v710, %v712
        %719 = vrot.lane.b32.xlu0 %v627, 95
        %v720 = vpop.permute.xlu0 %719
        %721 = vrot.lane.b32.xlu0 %v628, 95
        %v722 = vpop.permute.xlu0 %721
        %723 = vrot.lane.b32.xlu0 %v629, 95
        %v724 = vpop.permute.xlu0 %723
        %vm725 = vcmask 777216
        %v726 = vsel %vm725, %v720, %v722
        %v727 = vsel %vm725, %v722, %v724
        %731 = vrot.lane.b32.xlu0 %v648, 94
        %v732 = vpop.permute.xlu0 %731
        %733 = vrot.lane.b32.xlu0 %v649, 94
        %v734 = vpop.permute.xlu0 %733
        %735 = vrot.lane.b32.xlu0 %v650, 94
        %v736 = vpop.permute.xlu0 %735
        %vm737 = vcmask 769024
        %v738 = vsel %vm737, %v732, %v734
        %v739 = vsel %vm737, %v734, %v736
        %s740 = scalar_lea.vmem %s1, 16
        %v741 = vld [vmem:[%s740] sm:$0xff]
        %742 = vset.pattern.permute.xlu0 2
        %743 = vperm.xlu0 %742, %v463
        %v744 = vpop.permute.xlu0 %743
        %749 = vrot.lane.b32.xlu0 %v501, 17
        %v750 = vpop.permute.xlu0 %749
        %751 = vrot.lane.b32.xlu0 %v502, 17
        %v752 = vpop.permute.xlu0 %751
        %753 = vrot.lane.b32.xlu0 %v503, 17
        %v754 = vpop.permute.xlu0 %753
        %755 = vrot.lane.b32.xlu0 %v660, 17
        %v756 = vpop.permute.xlu0 %755
        %757 = vrot.lane.b32.xlu0 %v661, 17
        %v758 = vpop.permute.xlu0 %757
        %759 = vrot.lane.b32.xlu0 %v659, 17
        %v760 = vpop.permute.xlu0 %759
        %761 = vrot.lane.b32.xlu0 %v672, 17
        %v762 = vpop.permute.xlu0 %761
        %763 = vrot.lane.b32.xlu0 %v673, 17
        %v764 = vpop.permute.xlu0 %763
        %765 = vrot.lane.b32.xlu0 %v670, 17
        %v766 = vpop.permute.xlu0 %765
        %767 = vrot.lane.b32.xlu0 %v683, 17
        %v768 = vpop.permute.xlu0 %767
        %769 = vrot.lane.b32.xlu0 %v684, 17
        %v770 = vpop.permute.xlu0 %769
        %771 = vrot.lane.b32.xlu0 %v682, 17
        %v772 = vpop.permute.xlu0 %771
        %773 = vrot.lane.b32.xlu0 %v688, 17
        %v774 = vpop.permute.xlu0 %773
        %775 = vrot.lane.b32.xlu0 %v691, 17
        %v776 = vpop.permute.xlu0 %775
        %777 = vrot.lane.b32.xlu0 %v690, 17
        %v778 = vpop.permute.xlu0 %777
        %779 = vrot.lane.b32.xlu0 %v696, 17
        %v780 = vpop.permute.xlu0 %779
        %781 = vrot.lane.b32.xlu0 %v702, 17
        %v782 = vpop.permute.xlu0 %781
        %783 = vrot.lane.b32.xlu0 %v703, 17
        %v784 = vpop.permute.xlu0 %783
        %785 = vrot.lane.b32.xlu0 %v708, 17
        %v786 = vpop.permute.xlu0 %785
        %787 = vrot.lane.b32.xlu0 %v714, 17
        %v788 = vpop.permute.xlu0 %787
        %789 = vrot.lane.b32.xlu0 %v715, 17
        %v790 = vpop.permute.xlu0 %789
        %791 = vrot.lane.b32.xlu0 %v720, 17
        %v792 = vpop.permute.xlu0 %791
        %793 = vrot.lane.b32.xlu0 %v726, 17
        %v794 = vpop.permute.xlu0 %793
        %795 = vrot.lane.b32.xlu0 %v727, 17
        %v796 = vpop.permute.xlu0 %795
        %797 = vrot.lane.b32.xlu0 %v732, 17
        %v798 = vpop.permute.xlu0 %797
        %799 = vrot.lane.b32.xlu0 %v738, 17
        %v800 = vpop.permute.xlu0 %799
        %801 = vrot.lane.b32.xlu0 %v739, 17
        %v802 = vpop.permute.xlu0 %801
        %v803 = vsel %vm643, %v750, %v752
        %v804 = vsel %vm643, %v752, %v754
        %v805 = vsel %vm643, %v756, %v758
        %v806 = vsel %vm643, %v758, %v760
        %v807 = vsel %vm643, %v762, %v764
        %v808 = vsel %vm643, %v764, %v766
        %v809 = vsel %vm643, %v768, %v770
        %v810 = vsel %vm643, %v770, %v772
        %v811 = vsel %vm643, %v774, %v776
        %v812 = vsel %vm643, %v776, %v778
        %v813 = vsel %vm643, %v780, %v782
        %v814 = vsel %vm643, %v782, %v784
        %v815 = vsel %vm643, %v786, %v788
        %v816 = vsel %vm643, %v788, %v790
        %v817 = vsel %vm643, %v792, %v794
        %v818 = vsel %vm643, %v794, %v796
        %v819 = vsel %vm643, %v798, %v800
        %v820 = vsel %vm643, %v800, %v802
        %vm839 = vcmask 588800
        %v841 = vsel %vm839, %v741, 0
        %843 = vmatprep.subr.mxu0 %v804
        %844 = vmatpush1.msra.mxu0 %v803
        %845 = vmatprep.subr.mxu0 %v806
        %846 = vmatpush1.msra.mxu0 %v805
        %847 = vmatprep.subr.mxu0 %v808
        %848 = vmatpush1.msra.mxu0 %v807
        %849 = vmatprep.subr.mxu0 %v810
        %850 = vmatpush1.msra.mxu0 %v809
        %851 = vmatprep.subr.mxu0 %v812
        %852 = vmatpush1.msra.mxu0 %v811
        %853 = vmatprep.subr.mxu0 %v814
        %854 = vmatpush1.msra.mxu0 %v813
        %855 = vmatprep.subr.mxu0 %v816
        %856 = vmatpush1.msra.mxu0 %v815
        %857 = vmatprep.subr.mxu0 %v818
        %858 = vmatpush1.msra.mxu0 %v817
        %859 = vmatprep.subr.mxu0 %v820
        %860 = vmatpush1.msra.mxu0 %v819
        %861 = vmatprep.subr.mxu0 0.0
        %862 = vmatpush1.msra.mxu0 0.0
        %863 = vmatprep.subr.mxu0 0.0
        %864 = vmatpush1.msra.mxu0 0.0
        %865 = vmatprep.subr.mxu0 0.0
        %866 = vmatpush1.msra.mxu0 0.0
        %867 = vmatprep.subr.mxu0 0.0
        %868 = vmatpush1.msra.mxu0 0.0
        %869 = vmatprep.subr.mxu0 0.0
        %870 = vmatpush1.msra.mxu0 0.0
        %871 = vmatprep.subr.mxu0 0.0
        %872 = vmatpush1.msra.mxu0 0.0
        %873 = vmatprep.subr.mxu0 0.0
        %874 = vmatpush1.msra.mxu0 0.0
        %875 = vmatprep.subr.mxu0 0.0
        %876 = vmatpush1.msra.mxu0 0.0
        %877 = vmatprep.subr.mxu0 0.0
        %878 = vmatpush1.msra.mxu0 0.0
        %879 = vmatprep.subr.mxu0 0.0
        %880 = vmatpush1.msra.mxu0 0.0
        %881 = vmatprep.subr.mxu0 0.0
        %882 = vmatpush1.msra.mxu0 0.0
        %883 = vmatprep.subr.mxu0 0.0
        %884 = vmatpush1.msra.mxu0 0.0
        %885 = vmatprep.subr.mxu0 0.0
        %886 = vmatpush1.msra.mxu0 0.0
        %887 = vmatprep.subr.mxu0 0.0
        %888 = vmatpush1.msra.mxu0 0.0
        %889 = vmatprep.subr.mxu0 0.0
        %890 = vmatpush1.msra.mxu0 0.0
        %891 = vmatprep.subr.mxu0 0.0
        %892 = vmatpush1.msra.mxu0 0.0
        %893 = vmatprep.subr.mxu0 0.0
        %894 = vmatpush1.msra.mxu0 0.0
        %895 = vmatprep.subr.mxu0 0.0
        %896 = vmatpush1.msra.mxu0 0.0
        %897 = vmatprep.subr.mxu0 0.0
        %898 = vmatpush1.msra.mxu0 0.0
        %899 = vmatprep.subr.mxu0 0.0
        %900 = vmatpush1.msra.mxu0 0.0
        %901 = vmatprep.subr.mxu0 0.0
        %902 = vmatpush1.msra.mxu0 0.0
        %903 = vmatprep.subr.mxu0 0.0
        %904 = vmatpush1.msra.mxu0 0.0
        %905 = vmatprep.subr.mxu0 0.0
        %906 = vmatpush1.msra.mxu0 0.0
        %907 = vmatprep.mubr.f32.mxu0 0.0
        %908 = vmatmul.mubr.f32.gmra.mrb[0].mxu0 %v841
        %v909 = vpop.f32.mrb[0].mxu0
        %v910 = vadd.f32 %v744, %v909
        %v911 = vpop.f32.mrb[0].mxu0
        %v912 = vadd.f32 %v744, %v911
        %913 = vdwg.mxu0
        %s914 = scalar_lea.vmem %s2, 24
        %v915 = vld [vmem:[%s914] sm:$0xff]
        %917 = vset.pattern.permute.xlu0 0
        %918 = vperm.xlu0 %917, %v915
        %v919 = vpop.permute.xlu0 %918
        %v921 = vmul.f32 %v910, %v919
        %v922 = vmul.f32 %v912, %v919
        %923 = vset.pattern.permute.xlu0 1
        %924 = vperm.xlu0 %923, %v915
        %v925 = vpop.permute.xlu0 %924
        %v927 = vadd.f32 %v921, %v925
        %v928 = vadd.f32 %v922, %v925
        %v929 = vmul.f32 %v927, 0.33333334
        %v930 = vmul.f32 %v928, 0.33333334
        %v931 = vtanh.pop %v929
        %v932 = vtanh.pop %v930
        %v933 = vmul.f32 %v931, 3.0
        %v934 = vmul.f32 %v932, 3.0
        %s935 = scalar_lea.vmem %s1, 24
        %v936 = vld [vmem:[%s935] sm:$0xff]
        %937 = vset.pattern.permute.xlu0 2
        %938 = vperm.xlu0 %937, %v915
        %v939 = vpop.permute.xlu0 %938
        %vm941 = vcmask 64512
        %v943 = vsel %vm941, %v936, 0
        %945 = vmatprep.subr.mxu0 %v934
        %946 = vmatpush1.msra.mxu0 %v933
        %947 = vmatprep.subr.mxu0 0.0
        %948 = vmatpush1.msra.mxu0 0.0
        %949 = vmatprep.subr.mxu0 0.0
        %950 = vmatpush1.msra.mxu0 0.0
        %951 = vmatprep.subr.mxu0 0.0
        %952 = vmatpush1.msra.mxu0 0.0
        %953 = vmatprep.subr.mxu0 0.0
        %954 = vmatpush1.msra.mxu0 0.0
        %955 = vmatprep.subr.mxu0 0.0
        %956 = vmatpush1.msra.mxu0 0.0
        %957 = vmatprep.subr.mxu0 0.0
        %958 = vmatpush1.msra.mxu0 0.0
        %959 = vmatprep.subr.mxu0 0.0
        %960 = vmatpush1.msra.mxu0 0.0
        %961 = vmatprep.subr.mxu0 0.0
        %962 = vmatpush1.msra.mxu0 0.0
        %963 = vmatprep.subr.mxu0 0.0
        %964 = vmatpush1.msra.mxu0 0.0
        %965 = vmatprep.subr.mxu0 0.0
        %966 = vmatpush1.msra.mxu0 0.0
        %967 = vmatprep.subr.mxu0 0.0
        %968 = vmatpush1.msra.mxu0 0.0
        %969 = vmatprep.subr.mxu0 0.0
        %970 = vmatpush1.msra.mxu0 0.0
        %971 = vmatprep.subr.mxu0 0.0
        %972 = vmatpush1.msra.mxu0 0.0
        %973 = vmatprep.subr.mxu0 0.0
        %974 = vmatpush1.msra.mxu0 0.0
        %975 = vmatprep.subr.mxu0 0.0
        %976 = vmatpush1.msra.mxu0 0.0
        %977 = vmatprep.subr.mxu0 0.0
        %978 = vmatpush1.msra.mxu0 0.0
        %979 = vmatprep.subr.mxu0 0.0
        %980 = vmatpush1.msra.mxu0 0.0
        %981 = vmatprep.subr.mxu0 0.0
        %982 = vmatpush1.msra.mxu0 0.0
        %983 = vmatprep.subr.mxu0 0.0
        %984 = vmatpush1.msra.mxu0 0.0
        %985 = vmatprep.subr.mxu0 0.0
        %986 = vmatpush1.msra.mxu0 0.0
        %987 = vmatprep.subr.mxu0 0.0
        %988 = vmatpush1.msra.mxu0 0.0
        %989 = vmatprep.subr.mxu0 0.0
        %990 = vmatpush1.msra.mxu0 0.0
        %991 = vmatprep.subr.mxu0 0.0
        %992 = vmatpush1.msra.mxu0 0.0
        %993 = vmatprep.subr.mxu0 0.0
        %994 = vmatpush1.msra.mxu0 0.0
        %995 = vmatprep.subr.mxu0 0.0
        %996 = vmatpush1.msra.mxu0 0.0
        %997 = vmatprep.subr.mxu0 0.0
        %998 = vmatpush1.msra.mxu0 0.0
        %999 = vmatprep.subr.mxu0 0.0
        %1000 = vmatpush1.msra.mxu0 0.0
        %1001 = vmatprep.subr.mxu0 0.0
        %1002 = vmatpush1.msra.mxu0 0.0
        %1003 = vmatprep.subr.mxu0 0.0
        %1004 = vmatpush1.msra.mxu0 0.0
        %1005 = vmatprep.subr.mxu0 0.0
        %1006 = vmatpush1.msra.mxu0 0.0
        %1007 = vmatprep.subr.mxu0 0.0
        %1008 = vmatpush1.msra.mxu0 0.0
        %1009 = vmatprep.mubr.f32.mxu0 0.0
        %1010 = vmatmul.mubr.f32.gmra.mrb[0].mxu0 %v943
        %v1011 = vpop.f32.mrb[0].mxu0
        %v1012 = vadd.f32 %v939, %v1011
        %v1013 = vpop.f32.mrb[0].mxu0
        %v1014 = vadd.f32 %v939, %v1013
        %1015 = vdwg.mxu0
        %s1016 = scalar_lea.vmem %s2, 32
        %v1017 = vld [vmem:[%s1016] sm:$0xff]
        %1019 = vset.pattern.permute.xlu0 0
        %1020 = vperm.xlu0 %1019, %v1017
        %v1021 = vpop.permute.xlu0 %1020
        %v1023 = vunpack.c.l.s4 839922192
        %v1024 = vunpack.c.0.s8 %v1023
        %v1025 = vlaneseq
        %v1026 = vshrl.u32 %v1025, 7
        %v1027 = vsub.s32 %v1024, %v1026
        %v1028 = vrot.slane %v1021, %v1027
        %v1030 = vmul.f32 %v214, %v1028
        %1031 = vset.pattern.permute.xlu0 1
        %1032 = vperm.xlu0 %1031, %v1017
        %v1033 = vpop.permute.xlu0 %1032
        %v1035 = vunpack.c.l.s4 839922192
        %v1036 = vunpack.c.0.s8 %v1035
        %v1037 = vlaneseq
        %v1038 = vshrl.u32 %v1037, 7
        %v1039 = vsub.s32 %v1036, %v1038
        %v1040 = vrot.slane %v1033, %v1039
        %v1042 = vadd.f32 %v1030, %v1040
        %v1043 = vmul.f32 %v1042, 0.33333334
        %v1044 = vtanh.pop %v1043
        %v1045 = vmul.f32 %v1044, 3.0
        %s1046 = scalar_lea.vmem %s1, 32
        %v1047 = vld [vmem:[%s1046] sm:$0xff]
        %1048 = vset.pattern.permute.xlu0 2
        %1049 = vperm.xlu0 %1048, %v1017
        %v1050 = vpop.permute.xlu0 %1049
        %v1053 = vcombine.high %v1045, %v1045
        %v1055 = vsel %vm266, %v1047, 0
        %v1057 = vsel %vm270, %v1045, 0
        %v1059 = vsel %vm270, %v1053, 0
        %1061 = vmatprep.subr.mxu0 %v1059
        %1062 = vmatpush1.msra.mxu0 %v1057
        %1063 = vmatprep.subr.mxu0 0.0
        %1064 = vmatpush1.msra.mxu0 0.0
        %1065 = vmatprep.subr.mxu0 0.0
        %1066 = vmatpush1.msra.mxu0 0.0
        %1067 = vmatprep.subr.mxu0 0.0
        %1068 = vmatpush1.msra.mxu0 0.0
        %1069 = vmatprep.subr.mxu0 0.0
        %1070 = vmatpush1.msra.mxu0 0.0
        %1071 = vmatprep.subr.mxu0 0.0
        %1072 = vmatpush1.msra.mxu0 0.0
        %1073 = vmatprep.subr.mxu0 0.0
        %1074 = vmatpush1.msra.mxu0 0.0
        %1075 = vmatprep.subr.mxu0 0.0
        %1076 = vmatpush1.msra.mxu0 0.0
        %1077 = vmatprep.subr.mxu0 0.0
        %1078 = vmatpush1.msra.mxu0 0.0
        %1079 = vmatprep.subr.mxu0 0.0
        %1080 = vmatpush1.msra.mxu0 0.0
        %1081 = vmatprep.subr.mxu0 0.0
        %1082 = vmatpush1.msra.mxu0 0.0
        %1083 = vmatprep.subr.mxu0 0.0
        %1084 = vmatpush1.msra.mxu0 0.0
        %1085 = vmatprep.subr.mxu0 0.0
        %1086 = vmatpush1.msra.mxu0 0.0
        %1087 = vmatprep.subr.mxu0 0.0
        %1088 = vmatpush1.msra.mxu0 0.0
        %1089 = vmatprep.subr.mxu0 0.0
        %1090 = vmatpush1.msra.mxu0 0.0
        %1091 = vmatprep.subr.mxu0 0.0
        %1092 = vmatpush1.msra.mxu0 0.0
        %1093 = vmatprep.subr.mxu0 0.0
        %1094 = vmatpush1.msra.mxu0 0.0
        %1095 = vmatprep.subr.mxu0 0.0
        %1096 = vmatpush1.msra.mxu0 0.0
        %1097 = vmatprep.subr.mxu0 0.0
        %1098 = vmatpush1.msra.mxu0 0.0
        %1099 = vmatprep.subr.mxu0 0.0
        %1100 = vmatpush1.msra.mxu0 0.0
        %1101 = vmatprep.subr.mxu0 0.0
        %1102 = vmatpush1.msra.mxu0 0.0
        %1103 = vmatprep.subr.mxu0 0.0
        %1104 = vmatpush1.msra.mxu0 0.0
        %1105 = vmatprep.subr.mxu0 0.0
        %1106 = vmatpush1.msra.mxu0 0.0
        %1107 = vmatprep.subr.mxu0 0.0
        %1108 = vmatpush1.msra.mxu0 0.0
        %1109 = vmatprep.subr.mxu0 0.0
        %1110 = vmatpush1.msra.mxu0 0.0
        %1111 = vmatprep.subr.mxu0 0.0
        %1112 = vmatpush1.msra.mxu0 0.0
        %1113 = vmatprep.subr.mxu0 0.0
        %1114 = vmatpush1.msra.mxu0 0.0
        %1115 = vmatprep.subr.mxu0 0.0
        %1116 = vmatpush1.msra.mxu0 0.0
        %1117 = vmatprep.subr.mxu0 0.0
        %1118 = vmatpush1.msra.mxu0 0.0
        %1119 = vmatprep.subr.mxu0 0.0
        %1120 = vmatpush1.msra.mxu0 0.0
        %1121 = vmatprep.subr.mxu0 0.0
        %1122 = vmatpush1.msra.mxu0 0.0
        %1123 = vmatprep.subr.mxu0 0.0
        %1124 = vmatpush1.msra.mxu0 0.0
        %1125 = vmatprep.mubr.f32.mxu0 0.0
        %1126 = vmatmul.mubr.f32.gmra.mrb[0].mxu0 %v1055
        %v1127 = vpop.f32.mrb[0].mxu0
        %v1128 = vadd.f32 %v1050, %v1127
        %v1129 = vpop.f32.mrb[0].mxu0
        %v1130 = vadd.f32 %v1050, %v1129
        %1131 = vdwg.mxu0
        %s1132 = scalar_lea.vmem %s2, 40
        %v1133 = vld [vmem:[%s1132] sm:$0xff]
        %1135 = vset.pattern.permute.xlu0 0
        %1136 = vperm.xlu0 %1135, %v1133
        %v1137 = vpop.permute.xlu0 %1136
        %v1139 = vmul.f32 %v1128, %v1137
        %v1140 = vmul.f32 %v1130, %v1137
        %1141 = vset.pattern.permute.xlu0 1
        %1142 = vperm.xlu0 %1141, %v1133
        %v1143 = vpop.permute.xlu0 %1142
        %v1145 = vadd.f32 %v1139, %v1143
        %v1146 = vadd.f32 %v1140, %v1143
        %v1147 = vmul.f32 %v1145, 0.33333334
        %v1148 = vmul.f32 %v1146, 0.33333334
        %v1149 = vtanh.pop %v1147
        %v1150 = vtanh.pop %v1148
        %v1151 = vmul.f32 %v1149, 3.0
        %v1152 = vmul.f32 %v1150, 3.0
        %v1153 = vmul.f32 %v1152, %v493
        %v1154 = vmul.f32 %v1151, %v497
        %v1155 = vmul.f32 %v1152, %v495
        %v1156 = vmul.f32 %v1152, %v514
        %v1157 = vmul.f32 %v1151, %v518
        %v1158 = vmul.f32 %v1152, %v516
        %v1159 = vmul.f32 %v1152, %v535
        %v1160 = vmul.f32 %v1151, %v539
        %v1161 = vmul.f32 %v1152, %v537
        %v1162 = vmul.f32 %v1152, %v556
        %v1163 = vmul.f32 %v1151, %v560
        %v1164 = vmul.f32 %v1152, %v558
        %v1165 = vmul.f32 %v1151, %v577
        %v1166 = vmul.f32 %v1152, %v581
        %v1167 = vmul.f32 %v1151, %v579
        %v1168 = vmul.f32 %v1151, %v598
        %v1169 = vmul.f32 %v1152, %v602
        %v1170 = vmul.f32 %v1151, %v600
        %v1171 = vmul.f32 %v1151, %v619
        %v1172 = vmul.f32 %v1152, %v623
        %v1173 = vmul.f32 %v1151, %v621
        %v1174 = vmul.f32 %v1151, %v640
        %v1175 = vmul.f32 %v1152, %v644
        %v1176 = vmul.f32 %v1151, %v642
        %1180 = vrot.lane.b32.xlu0 %v1156, 127
        %v1181 = vpop.permute.xlu0 %1180
        %1182 = vrot.lane.b32.xlu0 %v1157, 127
        %v1183 = vpop.permute.xlu0 %1182
        %1184 = vrot.lane.b32.xlu0 %v1158, 127
        %v1185 = vpop.permute.xlu0 %1184
        %v1186 = vsel %vm559, %v1181, %v1183
        %v1187 = vsel %vm559, %v1183, %v1185
        %1191 = vrot.lane.b32.xlu0 %v1159, 126
        %v1192 = vpop.permute.xlu0 %1191
        %1193 = vrot.lane.b32.xlu0 %v1160, 126
        %v1194 = vpop.permute.xlu0 %1193
        %1195 = vrot.lane.b32.xlu0 %v1161, 126
        %v1196 = vpop.permute.xlu0 %1195
        %v1197 = vsel %vm671, %v1192, %v1194
        %v1198 = vsel %vm671, %v1194, %v1196
        %1202 = vrot.lane.b32.xlu0 %v1162, 112
        %v1203 = vpop.permute.xlu0 %1202
        %1204 = vrot.lane.b32.xlu0 %v1163, 112
        %v1205 = vpop.permute.xlu0 %1204
        %1206 = vrot.lane.b32.xlu0 %v1164, 112
        %v1207 = vpop.permute.xlu0 %1206
        %v1208 = vsel %vm517, %v1203, %v1205
        %v1209 = vsel %vm517, %v1205, %v1207
        %1212 = vrot.lane.b32.xlu0 %v1151, 111
        %v1213 = vpop.permute.xlu0 %1212
        %1214 = vrot.lane.b32.xlu0 %v1152, 111
        %v1215 = vpop.permute.xlu0 %1214
        %v1216 = vsel %vm496, %v1213, %v1215
        %1220 = vrot.lane.b32.xlu0 %v1165, 110
        %v1221 = vpop.permute.xlu0 %1220
        %1222 = vrot.lane.b32.xlu0 %v1166, 110
        %v1223 = vpop.permute.xlu0 %1222
        %1224 = vrot.lane.b32.xlu0 %v1167, 110
        %v1225 = vpop.permute.xlu0 %1224
        %v1226 = vsel %vm701, %v1221, %v1223
        %v1227 = vsel %vm701, %v1223, %v1225
        %1231 = vrot.lane.b32.xlu0 %v1168, 96
        %v1232 = vpop.permute.xlu0 %1231
        %1233 = vrot.lane.b32.xlu0 %v1169, 96
        %v1234 = vpop.permute.xlu0 %1233
        %1235 = vrot.lane.b32.xlu0 %v1170, 96
        %v1236 = vpop.permute.xlu0 %1235
        %v1237 = vsel %vm713, %v1232, %v1234
        %v1238 = vsel %vm713, %v1234, %v1236
        %1242 = vrot.lane.b32.xlu0 %v1171, 95
        %v1243 = vpop.permute.xlu0 %1242
        %1244 = vrot.lane.b32.xlu0 %v1172, 95
        %v1245 = vpop.permute.xlu0 %1244
        %1246 = vrot.lane.b32.xlu0 %v1173, 95
        %v1247 = vpop.permute.xlu0 %1246
        %v1248 = vsel %vm725, %v1243, %v1245
        %v1249 = vsel %vm725, %v1245, %v1247
        %1253 = vrot.lane.b32.xlu0 %v1174, 94
        %v1254 = vpop.permute.xlu0 %1253
        %1255 = vrot.lane.b32.xlu0 %v1175, 94
        %v1256 = vpop.permute.xlu0 %1255
        %1257 = vrot.lane.b32.xlu0 %v1176, 94
        %v1258 = vpop.permute.xlu0 %1257
        %v1259 = vsel %vm737, %v1254, %v1256
        %v1260 = vsel %vm737, %v1256, %v1258
        %s1261 = scalar_lea.vmem %s1, 40
        %v1262 = vld [vmem:[%s1261] sm:$0xff]
        %1263 = vset.pattern.permute.xlu0 2
        %1264 = vperm.xlu0 %1263, %v1133
        %v1265 = vpop.permute.xlu0 %1264
        %1270 = vrot.lane.b32.xlu0 %v1153, 17
        %v1271 = vpop.permute.xlu0 %1270
        %1272 = vrot.lane.b32.xlu0 %v1154, 17
        %v1273 = vpop.permute.xlu0 %1272
        %1274 = vrot.lane.b32.xlu0 %v1155, 17
        %v1275 = vpop.permute.xlu0 %1274
        %1276 = vrot.lane.b32.xlu0 %v1186, 17
        %v1277 = vpop.permute.xlu0 %1276
        %1278 = vrot.lane.b32.xlu0 %v1187, 17
        %v1279 = vpop.permute.xlu0 %1278
        %1280 = vrot.lane.b32.xlu0 %v1185, 17
        %v1281 = vpop.permute.xlu0 %1280
        %1282 = vrot.lane.b32.xlu0 %v1197, 17
        %v1283 = vpop.permute.xlu0 %1282
        %1284 = vrot.lane.b32.xlu0 %v1198, 17
        %v1285 = vpop.permute.xlu0 %1284
        %1286 = vrot.lane.b32.xlu0 %v1196, 17
        %v1287 = vpop.permute.xlu0 %1286
        %1288 = vrot.lane.b32.xlu0 %v1208, 17
        %v1289 = vpop.permute.xlu0 %1288
        %1290 = vrot.lane.b32.xlu0 %v1209, 17
        %v1291 = vpop.permute.xlu0 %1290
        %1292 = vrot.lane.b32.xlu0 %v1207, 17
        %v1293 = vpop.permute.xlu0 %1292
        %1294 = vrot.lane.b32.xlu0 %v1213, 17
        %v1295 = vpop.permute.xlu0 %1294
        %1296 = vrot.lane.b32.xlu0 %v1216, 17
        %v1297 = vpop.permute.xlu0 %1296
        %1298 = vrot.lane.b32.xlu0 %v1215, 17
        %v1299 = vpop.permute.xlu0 %1298
        %1300 = vrot.lane.b32.xlu0 %v1221, 17
        %v1301 = vpop.permute.xlu0 %1300
        %1302 = vrot.lane.b32.xlu0 %v1226, 17
        %v1303 = vpop.permute.xlu0 %1302
        %1304 = vrot.lane.b32.xlu0 %v1227, 17
        %v1305 = vpop.permute.xlu0 %1304
        %1306 = vrot.lane.b32.xlu0 %v1232, 17
        %v1307 = vpop.permute.xlu0 %1306
        %1308 = vrot.lane.b32.xlu0 %v1237, 17
        %v1309 = vpop.permute.xlu0 %1308
        %1310 = vrot.lane.b32.xlu0 %v1238, 17
        %v1311 = vpop.permute.xlu0 %1310
        %1312 = vrot.lane.b32.xlu0 %v1243, 17
        %v1313 = vpop.permute.xlu0 %1312
        %1314 = vrot.lane.b32.xlu0 %v1248, 17
        %v1315 = vpop.permute.xlu0 %1314
        %1316 = vrot.lane.b32.xlu0 %v1249, 17
        %v1317 = vpop.permute.xlu0 %1316
        %1318 = vrot.lane.b32.xlu0 %v1254, 17
        %v1319 = vpop.permute.xlu0 %1318
        %1320 = vrot.lane.b32.xlu0 %v1259, 17
        %v1321 = vpop.permute.xlu0 %1320
        %1322 = vrot.lane.b32.xlu0 %v1260, 17
        %v1323 = vpop.permute.xlu0 %1322
        %v1324 = vsel %vm643, %v1271, %v1273
        %v1325 = vsel %vm643, %v1273, %v1275
        %v1326 = vsel %vm643, %v1277, %v1279
        %v1327 = vsel %vm643, %v1279, %v1281
        %v1328 = vsel %vm643, %v1283, %v1285
        %v1329 = vsel %vm643, %v1285, %v1287
        %v1330 = vsel %vm643, %v1289, %v1291
        %v1331 = vsel %vm643, %v1291, %v1293
        %v1332 = vsel %vm643, %v1295, %v1297
        %v1333 = vsel %vm643, %v1297, %v1299
        %v1334 = vsel %vm643, %v1301, %v1303
        %v1335 = vsel %vm643, %v1303, %v1305
        %v1336 = vsel %vm643, %v1307, %v1309
        %v1337 = vsel %vm643, %v1309, %v1311
        %v1338 = vsel %vm643, %v1313, %v1315
        %v1339 = vsel %vm643, %v1315, %v1317
        %v1340 = vsel %vm643, %v1319, %v1321
        %v1341 = vsel %vm643, %v1321, %v1323
        %v1361 = vsel %vm839, %v1262, 0
        %1363 = vmatprep.subr.mxu0 %v1325
        %1364 = vmatpush1.msra.mxu0 %v1324
        %1365 = vmatprep.subr.mxu0 %v1327
        %1366 = vmatpush1.msra.mxu0 %v1326
        %1367 = vmatprep.subr.mxu0 %v1329
        %1368 = vmatpush1.msra.mxu0 %v1328
        %1369 = vmatprep.subr.mxu0 %v1331
        %1370 = vmatpush1.msra.mxu0 %v1330
        %1371 = vmatprep.subr.mxu0 %v1333
        %1372 = vmatpush1.msra.mxu0 %v1332
        %1373 = vmatprep.subr.mxu0 %v1335
        %1374 = vmatpush1.msra.mxu0 %v1334
        %1375 = vmatprep.subr.mxu0 %v1337
        %1376 = vmatpush1.msra.mxu0 %v1336
        %1377 = vmatprep.subr.mxu0 %v1339
        %1378 = vmatpush1.msra.mxu0 %v1338
        %1379 = vmatprep.subr.mxu0 %v1341
        %1380 = vmatpush1.msra.mxu0 %v1340
        %1381 = vmatprep.subr.mxu0 0.0
        %1382 = vmatpush1.msra.mxu0 0.0
        %1383 = vmatprep.subr.mxu0 0.0
        %1384 = vmatpush1.msra.mxu0 0.0
        %1385 = vmatprep.subr.mxu0 0.0
        %1386 = vmatpush1.msra.mxu0 0.0
        %1387 = vmatprep.subr.mxu0 0.0
        %1388 = vmatpush1.msra.mxu0 0.0
        %1389 = vmatprep.subr.mxu0 0.0
        %1390 = vmatpush1.msra.mxu0 0.0
        %1391 = vmatprep.subr.mxu0 0.0
        %1392 = vmatpush1.msra.mxu0 0.0
        %1393 = vmatprep.subr.mxu0 0.0
        %1394 = vmatpush1.msra.mxu0 0.0
        %1395 = vmatprep.subr.mxu0 0.0
        %1396 = vmatpush1.msra.mxu0 0.0
        %1397 = vmatprep.subr.mxu0 0.0
        %1398 = vmatpush1.msra.mxu0 0.0
        %1399 = vmatprep.subr.mxu0 0.0
        %1400 = vmatpush1.msra.mxu0 0.0
        %1401 = vmatprep.subr.mxu0 0.0
        %1402 = vmatpush1.msra.mxu0 0.0
        %1403 = vmatprep.subr.mxu0 0.0
        %1404 = vmatpush1.msra.mxu0 0.0
        %1405 = vmatprep.subr.mxu0 0.0
        %1406 = vmatpush1.msra.mxu0 0.0
        %1407 = vmatprep.subr.mxu0 0.0
        %1408 = vmatpush1.msra.mxu0 0.0
        %1409 = vmatprep.subr.mxu0 0.0
        %1410 = vmatpush1.msra.mxu0 0.0
        %1411 = vmatprep.subr.mxu0 0.0
        %1412 = vmatpush1.msra.mxu0 0.0
        %1413 = vmatprep.subr.mxu0 0.0
        %1414 = vmatpush1.msra.mxu0 0.0
        %1415 = vmatprep.subr.mxu0 0.0
        %1416 = vmatpush1.msra.mxu0 0.0
        %1417 = vmatprep.subr.mxu0 0.0
        %1418 = vmatpush1.msra.mxu0 0.0
        %1419 = vmatprep.subr.mxu0 0.0
        %1420 = vmatpush1.msra.mxu0 0.0
        %1421 = vmatprep.subr.mxu0 0.0
        %1422 = vmatpush1.msra.mxu0 0.0
        %1423 = vmatprep.subr.mxu0 0.0
        %1424 = vmatpush1.msra.mxu0 0.0
        %1425 = vmatprep.subr.mxu0 0.0
        %1426 = vmatpush1.msra.mxu0 0.0
        %1427 = vmatprep.mubr.f32.mxu0 0.0
        %1428 = vmatmul.mubr.f32.gmra.mrb[0].mxu0 %v1361
        %v1429 = vpop.f32.mrb[0].mxu0
        %v1430 = vadd.f32 %v1265, %v1429
        %v1431 = vpop.f32.mrb[0].mxu0
        %v1432 = vadd.f32 %v1265, %v1431
        %1433 = vdwg.mxu0
        %s1434 = scalar_lea.vmem %s2, 48
        %v1435 = vld [vmem:[%s1434] sm:$0xff]
        %1437 = vset.pattern.permute.xlu0 0
        %1438 = vperm.xlu0 %1437, %v1435
        %v1439 = vpop.permute.xlu0 %1438
        %v1441 = vmul.f32 %v1430, %v1439
        %v1442 = vmul.f32 %v1432, %v1439
        %1443 = vset.pattern.permute.xlu0 1
        %1444 = vperm.xlu0 %1443, %v1435
        %v1445 = vpop.permute.xlu0 %1444
        %v1447 = vadd.f32 %v1441, %v1445
        %v1448 = vadd.f32 %v1442, %v1445
        %v1449 = vmul.f32 %v1447, 0.33333334
        %v1450 = vmul.f32 %v1448, 0.33333334
        %v1451 = vtanh.pop %v1449
        %v1452 = vtanh.pop %v1450
        %v1453 = vmul.f32 %v1451, 3.0
        %v1454 = vmul.f32 %v1452, 3.0
        %v1455 = vmul.f32 %v1454, %v493
        %v1456 = vmul.f32 %v1453, %v497
        %v1457 = vmul.f32 %v1454, %v495
        %v1458 = vmul.f32 %v1454, %v514
        %v1459 = vmul.f32 %v1453, %v518
        %v1460 = vmul.f32 %v1454, %v516
        %v1461 = vmul.f32 %v1454, %v535
        %v1462 = vmul.f32 %v1453, %v539
        %v1463 = vmul.f32 %v1454, %v537
        %v1464 = vmul.f32 %v1454, %v556
        %v1465 = vmul.f32 %v1453, %v560
        %v1466 = vmul.f32 %v1454, %v558
        %v1467 = vmul.f32 %v1453, %v577
        %v1468 = vmul.f32 %v1454, %v581
        %v1469 = vmul.f32 %v1453, %v579
        %v1470 = vmul.f32 %v1453, %v598
        %v1471 = vmul.f32 %v1454, %v602
        %v1472 = vmul.f32 %v1453, %v600
        %v1473 = vmul.f32 %v1453, %v619
        %v1474 = vmul.f32 %v1454, %v623
        %v1475 = vmul.f32 %v1453, %v621
        %v1476 = vmul.f32 %v1453, %v640
        %v1477 = vmul.f32 %v1454, %v644
        %v1478 = vmul.f32 %v1453, %v642
        %1482 = vrot.lane.b32.xlu0 %v1458, 127
        %v1483 = vpop.permute.xlu0 %1482
        %1484 = vrot.lane.b32.xlu0 %v1459, 127
        %v1485 = vpop.permute.xlu0 %1484
        %1486 = vrot.lane.b32.xlu0 %v1460, 127
        %v1487 = vpop.permute.xlu0 %1486
        %v1488 = vsel %vm559, %v1483, %v1485
        %v1489 = vsel %vm559, %v1485, %v1487
        %1493 = vrot.lane.b32.xlu0 %v1461, 126
        %v1494 = vpop.permute.xlu0 %1493
        %1495 = vrot.lane.b32.xlu0 %v1462, 126
        %v1496 = vpop.permute.xlu0 %1495
        %1497 = vrot.lane.b32.xlu0 %v1463, 126
        %v1498 = vpop.permute.xlu0 %1497
        %v1499 = vsel %vm671, %v1494, %v1496
        %v1500 = vsel %vm671, %v1496, %v1498
        %1504 = vrot.lane.b32.xlu0 %v1464, 112
        %v1505 = vpop.permute.xlu0 %1504
        %1506 = vrot.lane.b32.xlu0 %v1465, 112
        %v1507 = vpop.permute.xlu0 %1506
        %1508 = vrot.lane.b32.xlu0 %v1466, 112
        %v1509 = vpop.permute.xlu0 %1508
        %v1510 = vsel %vm517, %v1505, %v1507
        %v1511 = vsel %vm517, %v1507, %v1509
        %1514 = vrot.lane.b32.xlu0 %v1453, 111
        %v1515 = vpop.permute.xlu0 %1514
        %1516 = vrot.lane.b32.xlu0 %v1454, 111
        %v1517 = vpop.permute.xlu0 %1516
        %v1518 = vsel %vm496, %v1515, %v1517
        %1522 = vrot.lane.b32.xlu0 %v1467, 110
        %v1523 = vpop.permute.xlu0 %1522
        %1524 = vrot.lane.b32.xlu0 %v1468, 110
        %v1525 = vpop.permute.xlu0 %1524
        %1526 = vrot.lane.b32.xlu0 %v1469, 110
        %v1527 = vpop.permute.xlu0 %1526
        %v1528 = vsel %vm701, %v1523, %v1525
        %v1529 = vsel %vm701, %v1525, %v1527
        %1533 = vrot.lane.b32.xlu0 %v1470, 96
        %v1534 = vpop.permute.xlu0 %1533
        %1535 = vrot.lane.b32.xlu0 %v1471, 96
        %v1536 = vpop.permute.xlu0 %1535
        %1537 = vrot.lane.b32.xlu0 %v1472, 96
        %v1538 = vpop.permute.xlu0 %1537
        %v1539 = vsel %vm713, %v1534, %v1536
        %v1540 = vsel %vm713, %v1536, %v1538
        %1544 = vrot.lane.b32.xlu0 %v1473, 95
        %v1545 = vpop.permute.xlu0 %1544
        %1546 = vrot.lane.b32.xlu0 %v1474, 95
        %v1547 = vpop.permute.xlu0 %1546
        %1548 = vrot.lane.b32.xlu0 %v1475, 95
        %v1549 = vpop.permute.xlu0 %1548
        %v1550 = vsel %vm725, %v1545, %v1547
        %v1551 = vsel %vm725, %v1547, %v1549
        %1555 = vrot.lane.b32.xlu0 %v1476, 94
        %v1556 = vpop.permute.xlu0 %1555
        %1557 = vrot.lane.b32.xlu0 %v1477, 94
        %v1558 = vpop.permute.xlu0 %1557
        %1559 = vrot.lane.b32.xlu0 %v1478, 94
        %v1560 = vpop.permute.xlu0 %1559
        %v1561 = vsel %vm737, %v1556, %v1558
        %v1562 = vsel %vm737, %v1558, %v1560
        %s1563 = scalar_lea.vmem %s1, 48
        %v1564 = vld [vmem:[%s1563] sm:$0xff]
        %1565 = vset.pattern.permute.xlu0 2
        %1566 = vperm.xlu0 %1565, %v1435
        %v1567 = vpop.permute.xlu0 %1566
        %1572 = vrot.lane.b32.xlu0 %v1455, 17
        %v1573 = vpop.permute.xlu0 %1572
        %1574 = vrot.lane.b32.xlu0 %v1456, 17
        %v1575 = vpop.permute.xlu0 %1574
        %1576 = vrot.lane.b32.xlu0 %v1457, 17
        %v1577 = vpop.permute.xlu0 %1576
        %1578 = vrot.lane.b32.xlu0 %v1488, 17
        %v1579 = vpop.permute.xlu0 %1578
        %1580 = vrot.lane.b32.xlu0 %v1489, 17
        %v1581 = vpop.permute.xlu0 %1580
        %1582 = vrot.lane.b32.xlu0 %v1487, 17
        %v1583 = vpop.permute.xlu0 %1582
        %1584 = vrot.lane.b32.xlu0 %v1499, 17
        %v1585 = vpop.permute.xlu0 %1584
        %1586 = vrot.lane.b32.xlu0 %v1500, 17
        %v1587 = vpop.permute.xlu0 %1586
        %1588 = vrot.lane.b32.xlu0 %v1498, 17
        %v1589 = vpop.permute.xlu0 %1588
        %1590 = vrot.lane.b32.xlu0 %v1510, 17
        %v1591 = vpop.permute.xlu0 %1590
        %1592 = vrot.lane.b32.xlu0 %v1511, 17
        %v1593 = vpop.permute.xlu0 %1592
        %1594 = vrot.lane.b32.xlu0 %v1509, 17
        %v1595 = vpop.permute.xlu0 %1594
        %1596 = vrot.lane.b32.xlu0 %v1515, 17
        %v1597 = vpop.permute.xlu0 %1596
        %1598 = vrot.lane.b32.xlu0 %v1518, 17
        %v1599 = vpop.permute.xlu0 %1598
        %1600 = vrot.lane.b32.xlu0 %v1517, 17
        %v1601 = vpop.permute.xlu0 %1600
        %1602 = vrot.lane.b32.xlu0 %v1523, 17
        %v1603 = vpop.permute.xlu0 %1602
        %1604 = vrot.lane.b32.xlu0 %v1528, 17
        %v1605 = vpop.permute.xlu0 %1604
        %1606 = vrot.lane.b32.xlu0 %v1529, 17
        %v1607 = vpop.permute.xlu0 %1606
        %1608 = vrot.lane.b32.xlu0 %v1534, 17
        %v1609 = vpop.permute.xlu0 %1608
        %1610 = vrot.lane.b32.xlu0 %v1539, 17
        %v1611 = vpop.permute.xlu0 %1610
        %1612 = vrot.lane.b32.xlu0 %v1540, 17
        %v1613 = vpop.permute.xlu0 %1612
        %1614 = vrot.lane.b32.xlu0 %v1545, 17
        %v1615 = vpop.permute.xlu0 %1614
        %1616 = vrot.lane.b32.xlu0 %v1550, 17
        %v1617 = vpop.permute.xlu0 %1616
        %1618 = vrot.lane.b32.xlu0 %v1551, 17
        %v1619 = vpop.permute.xlu0 %1618
        %1620 = vrot.lane.b32.xlu0 %v1556, 17
        %v1621 = vpop.permute.xlu0 %1620
        %1622 = vrot.lane.b32.xlu0 %v1561, 17
        %v1623 = vpop.permute.xlu0 %1622
        %1624 = vrot.lane.b32.xlu0 %v1562, 17
        %v1625 = vpop.permute.xlu0 %1624
        %v1626 = vsel %vm643, %v1573, %v1575
        %v1627 = vsel %vm643, %v1575, %v1577
        %v1628 = vsel %vm643, %v1579, %v1581
        %v1629 = vsel %vm643, %v1581, %v1583
        %v1630 = vsel %vm643, %v1585, %v1587
        %v1631 = vsel %vm643, %v1587, %v1589
        %v1632 = vsel %vm643, %v1591, %v1593
        %v1633 = vsel %vm643, %v1593, %v1595
        %v1634 = vsel %vm643, %v1597, %v1599
        %v1635 = vsel %vm643, %v1599, %v1601
        %v1636 = vsel %vm643, %v1603, %v1605
        %v1637 = vsel %vm643, %v1605, %v1607
        %v1638 = vsel %vm643, %v1609, %v1611
        %v1639 = vsel %vm643, %v1611, %v1613
        %v1640 = vsel %vm643, %v1615, %v1617
        %v1641 = vsel %vm643, %v1617, %v1619
        %v1642 = vsel %vm643, %v1621, %v1623
        %v1643 = vsel %vm643, %v1623, %v1625
        %v1663 = vsel %vm839, %v1564, 0
        %1665 = vmatprep.subr.mxu0 %v1627
        %1666 = vmatpush1.msra.mxu0 %v1626
        %1667 = vmatprep.subr.mxu0 %v1629
        %1668 = vmatpush1.msra.mxu0 %v1628
        %1669 = vmatprep.subr.mxu0 %v1631
        %1670 = vmatpush1.msra.mxu0 %v1630
        %1671 = vmatprep.subr.mxu0 %v1633
        %1672 = vmatpush1.msra.mxu0 %v1632
        %1673 = vmatprep.subr.mxu0 %v1635
        %1674 = vmatpush1.msra.mxu0 %v1634
        %1675 = vmatprep.subr.mxu0 %v1637
        %1676 = vmatpush1.msra.mxu0 %v1636
        %1677 = vmatprep.subr.mxu0 %v1639
        %1678 = vmatpush1.msra.mxu0 %v1638
        %1679 = vmatprep.subr.mxu0 %v1641
        %1680 = vmatpush1.msra.mxu0 %v1640
        %1681 = vmatprep.subr.mxu0 %v1643
        %1682 = vmatpush1.msra.mxu0 %v1642
        %1683 = vmatprep.subr.mxu0 0.0
        %1684 = vmatpush1.msra.mxu0 0.0
        %1685 = vmatprep.subr.mxu0 0.0
        %1686 = vmatpush1.msra.mxu0 0.0
        %1687 = vmatprep.subr.mxu0 0.0
        %1688 = vmatpush1.msra.mxu0 0.0
        %1689 = vmatprep.subr.mxu0 0.0
        %1690 = vmatpush1.msra.mxu0 0.0
        %1691 = vmatprep.subr.mxu0 0.0
        %1692 = vmatpush1.msra.mxu0 0.0
        %1693 = vmatprep.subr.mxu0 0.0
        %1694 = vmatpush1.msra.mxu0 0.0
        %1695 = vmatprep.subr.mxu0 0.0
        %1696 = vmatpush1.msra.mxu0 0.0
        %1697 = vmatprep.subr.mxu0 0.0
        %1698 = vmatpush1.msra.mxu0 0.0
        %1699 = vmatprep.subr.mxu0 0.0
        %1700 = vmatpush1.msra.mxu0 0.0
        %1701 = vmatprep.subr.mxu0 0.0
        %1702 = vmatpush1.msra.mxu0 0.0
        %1703 = vmatprep.subr.mxu0 0.0
        %1704 = vmatpush1.msra.mxu0 0.0
        %1705 = vmatprep.subr.mxu0 0.0
        %1706 = vmatpush1.msra.mxu0 0.0
        %1707 = vmatprep.subr.mxu0 0.0
        %1708 = vmatpush1.msra.mxu0 0.0
        %1709 = vmatprep.subr.mxu0 0.0
        %1710 = vmatpush1.msra.mxu0 0.0
        %1711 = vmatprep.subr.mxu0 0.0
        %1712 = vmatpush1.msra.mxu0 0.0
        %1713 = vmatprep.subr.mxu0 0.0
        %1714 = vmatpush1.msra.mxu0 0.0
        %1715 = vmatprep.subr.mxu0 0.0
        %1716 = vmatpush1.msra.mxu0 0.0
        %1717 = vmatprep.subr.mxu0 0.0
        %1718 = vmatpush1.msra.mxu0 0.0
        %1719 = vmatprep.subr.mxu0 0.0
        %1720 = vmatpush1.msra.mxu0 0.0
        %1721 = vmatprep.subr.mxu0 0.0
        %1722 = vmatpush1.msra.mxu0 0.0
        %1723 = vmatprep.subr.mxu0 0.0
        %1724 = vmatpush1.msra.mxu0 0.0
        %1725 = vmatprep.subr.mxu0 0.0
        %1726 = vmatpush1.msra.mxu0 0.0
        %1727 = vmatprep.subr.mxu0 0.0
        %1728 = vmatpush1.msra.mxu0 0.0
        %1729 = vmatprep.mubr.f32.mxu0 0.0
        %1730 = vmatmul.mubr.f32.gmra.mrb[0].mxu0 %v1663
        %v1731 = vpop.f32.mrb[0].mxu0
        %v1732 = vadd.f32 %v1567, %v1731
        %v1733 = vpop.f32.mrb[0].mxu0
        %v1734 = vadd.f32 %v1567, %v1733
        %1735 = vdwg.mxu0
        %s1736 = scalar_lea.vmem %s2, 56
        %v1737 = vld [vmem:[%s1736] sm:$0xff]
        %1739 = vset.pattern.permute.xlu0 0
        %1740 = vperm.xlu0 %1739, %v1737
        %v1741 = vpop.permute.xlu0 %1740
        %v1743 = vmul.f32 %v1732, %v1741
        %v1744 = vmul.f32 %v1734, %v1741
        %1745 = vset.pattern.permute.xlu0 1
        %1746 = vperm.xlu0 %1745, %v1737
        %v1747 = vpop.permute.xlu0 %1746
        %v1749 = vadd.f32 %v1743, %v1747
        %v1750 = vadd.f32 %v1744, %v1747
        %v1751 = vmul.f32 %v1749, 0.33333334
        %v1752 = vmul.f32 %v1750, 0.33333334
        %v1753 = vtanh.pop %v1751
        %v1754 = vtanh.pop %v1752
        %v1755 = vmul.f32 %v1753, 3.0
        %v1756 = vmul.f32 %v1754, 3.0
        %s1757 = scalar_lea.vmem %s1, 56
        %v1758 = vld [vmem:[%s1757] sm:$0xff]
        %1759 = vset.pattern.permute.xlu0 2
        %1760 = vperm.xlu0 %1759, %v1737
        %v1761 = vpop.permute.xlu0 %1760
        %v1764 = vsel %vm941, %v1758, 0
        %1766 = vmatprep.subr.mxu0 %v1756
        %1767 = vmatpush1.msra.mxu0 %v1755
        %1768 = vmatprep.subr.mxu0 0.0
        %1769 = vmatpush1.msra.mxu0 0.0
        %1770 = vmatprep.subr.mxu0 0.0
        %1771 = vmatpush1.msra.mxu0 0.0
        %1772 = vmatprep.subr.mxu0 0.0
        %1773 = vmatpush1.msra.mxu0 0.0
        %1774 = vmatprep.subr.mxu0 0.0
        %1775 = vmatpush1.msra.mxu0 0.0
        %1776 = vmatprep.subr.mxu0 0.0
        %1777 = vmatpush1.msra.mxu0 0.0
        %1778 = vmatprep.subr.mxu0 0.0
        %1779 = vmatpush1.msra.mxu0 0.0
        %1780 = vmatprep.subr.mxu0 0.0
        %1781 = vmatpush1.msra.mxu0 0.0
        %1782 = vmatprep.subr.mxu0 0.0
        %1783 = vmatpush1.msra.mxu0 0.0
        %1784 = vmatprep.subr.mxu0 0.0
        %1785 = vmatpush1.msra.mxu0 0.0
        %1786 = vmatprep.subr.mxu0 0.0
        %1787 = vmatpush1.msra.mxu0 0.0
        %1788 = vmatprep.subr.mxu0 0.0
        %1789 = vmatpush1.msra.mxu0 0.0
        %1790 = vmatprep.subr.mxu0 0.0
        %1791 = vmatpush1.msra.mxu0 0.0
        %1792 = vmatprep.subr.mxu0 0.0
        %1793 = vmatpush1.msra.mxu0 0.0
        %1794 = vmatprep.subr.mxu0 0.0
        %1795 = vmatpush1.msra.mxu0 0.0
        %1796 = vmatprep.subr.mxu0 0.0
        %1797 = vmatpush1.msra.mxu0 0.0
        %1798 = vmatprep.subr.mxu0 0.0
        %1799 = vmatpush1.msra.mxu0 0.0
        %1800 = vmatprep.subr.mxu0 0.0
        %1801 = vmatpush1.msra.mxu0 0.0
        %1802 = vmatprep.subr.mxu0 0.0
        %1803 = vmatpush1.msra.mxu0 0.0
        %1804 = vmatprep.subr.mxu0 0.0
        %1805 = vmatpush1.msra.mxu0 0.0
        %1806 = vmatprep.subr.mxu0 0.0
        %1807 = vmatpush1.msra.mxu0 0.0
        %1808 = vmatprep.subr.mxu0 0.0
        %1809 = vmatpush1.msra.mxu0 0.0
        %1810 = vmatprep.subr.mxu0 0.0
        %1811 = vmatpush1.msra.mxu0 0.0
        %1812 = vmatprep.subr.mxu0 0.0
        %1813 = vmatpush1.msra.mxu0 0.0
        %1814 = vmatprep.subr.mxu0 0.0
        %1815 = vmatpush1.msra.mxu0 0.0
        %1816 = vmatprep.subr.mxu0 0.0
        %1817 = vmatpush1.msra.mxu0 0.0
        %1818 = vmatprep.subr.mxu0 0.0
        %1819 = vmatpush1.msra.mxu0 0.0
        %1820 = vmatprep.subr.mxu0 0.0
        %1821 = vmatpush1.msra.mxu0 0.0
        %1822 = vmatprep.subr.mxu0 0.0
        %1823 = vmatpush1.msra.mxu0 0.0
        %1824 = vmatprep.subr.mxu0 0.0
        %1825 = vmatpush1.msra.mxu0 0.0
        %1826 = vmatprep.subr.mxu0 0.0
        %1827 = vmatpush1.msra.mxu0 0.0
        %1828 = vmatprep.subr.mxu0 0.0
        %1829 = vmatpush1.msra.mxu0 0.0
        %1830 = vmatprep.mubr.f32.mxu0 0.0
        %1831 = vmatmul.mubr.f32.gmra.mrb[0].mxu0 %v1764
        %v1832 = vpop.f32.mrb[0].mxu0
        %v1833 = vadd.f32 %v1761, %v1832
        %v1834 = vpop.f32.mrb[0].mxu0
        %v1835 = vadd.f32 %v1761, %v1834
        %1836 = vdwg.mxu0
        %v1839 = vcombine.low %v342, %v344
        %v1841 = vadd.f32 %v214, %v1839
        %v1842 = vadd.f32 %v1012, %v1833
        %v1843 = vadd.f32 %v1014, %v1835
        %v1846 = vcombine.low %v1842, %v1843
        %v1848 = vadd.f32 %v1841, %v1846
        %1849 = vst [vmem:[%s213] sm:$0xff] %v1848
        %s1850 = sand.u32 %s118, 1
        %s1851 = scalar_lea.sflag [#allocation4], %s1850
        %s1852 = sand.u32 %s118, 1
        %s1853 = smul.addr %s1852, 8
        %s1854 = scalar_lea.vmem [#allocation5], %s1853
        // Predicated region
        $region41: #{tpu_custom_call.1} parent=35 // pred_check
          %p1855 = pneg %p128
        $region42: #{tpu_custom_call.1} parent=35 // pred_check_branch
          %1857 = sbr.rel (%p1855) target = $region44
        $region43: #{tpu_custom_call.1} parent=35 // pred_region
          %s1859 = ssub.s32 128, 128
          %1860 = vsyncadd %s1851, %s1859
          %s1861 = smul.addr %s21, 2
          %s1862 = smul.addr %s1861, 64
          %s1863 = scalar_lea.hbm %s4, %s1862
          %s1865 = sshll.u32 %s1854, 4
          %s1866 = int_to_ptr.vmem [resolvable:$true] %s1865
          %1868 = dma.vmem_to_hbm [thread:$0]  %s1866, 128, %s1863, %s1851
        $region44: #{tpu_custom_call.1} parent=35 // pred_fallthru
          _
      $region36: #{tpu_custom_call.1} parent=5 // pred_fallthru
        _
      %p1869 = scmp.le.s32.totalorder 2, %s16
      // Predicated region
      $region45: #{tpu_custom_call.1} parent=5 // pred_check
        %p1870 = pneg %p1869
      $region46: #{tpu_custom_call.1} parent=5 // pred_check_branch
        %1872 = sbr.rel (%p1870) target = $region48
      $region47: #{tpu_custom_call.1} parent=5 // pred_region
        %s1873 = ssub.s32 %s16, 2
        // Predicated region
        $region49: #{tpu_custom_call.1} parent=47 // pred_check
          %p1874 = pneg %p134
        $region50: #{tpu_custom_call.1} parent=47 // pred_check_branch
          %1876 = sbr.rel (%p1874) target = $region52
        $region51: #{tpu_custom_call.1} parent=47 // pred_region
          %s1877 = sand.u32 %s119, 1
          %s1878 = scalar_lea.sflag [#allocation4], %s1877
          %s1879 = sand.u32 %s119, 1
          %s1880 = smul.addr %s1879, 8
          %s1881 = scalar_lea.vmem [#allocation5], %s1880
          %1882 = dma.done %s1878, 128
        $region52: #{tpu_custom_call.1} parent=47 // pred_fallthru
          _
      $region48: #{tpu_custom_call.1} parent=5 // pred_fallthru
        _
    $region6: #{tpu_custom_call.1} parent=1 // loop_footer
      %s20 = sadd.s32 1, %s16
    $region7: #{tpu_custom_call.1} parent=1 // loop_footer_branch
      %15 = sbr.rel target = $region3
    $region8: #{tpu_custom_call.1} parent=1 // loop_exit
      _
    %1883 = vsyncpa [#allocation3], 1
    %s1884 = scalar_lea.sflag [#allocation3], 1
    %1885 = vsyncpa %s1884, 1
    %1886 = vsyncpa [#allocation4], 1
    %s1887 = scalar_lea.sflag [#allocation4], 1
    %1888 = vsyncpa %s1887, 1

</llo_original>
